<compile_context>
chip_gen: v7x
topology: tpu7x:2x2x1
jax: 0.10.0
libtpu: 0.0.40
codegen_flags: <defaults>
</compile_context>

<pallas_src>
import functools
import math

import jax
import jax.numpy as jnp
from jax.experimental import pallas as pl
from jax.experimental.pallas import tpu as pltpu

EPS = 1e-5                      # torch.nn.LayerNorm default eps
MAX_ROW_TILE = 1024             # rows per grid step
VMEM_LIMIT = 32 * 1024 * 1024
COMPUTE_DTYPE = jnp.bfloat16    # MXU operand dtype (f32 accumulation kept)


# ----------------------------------------------------------------------------
# helpers
# ----------------------------------------------------------------------------
def _ln(x, gamma, beta):
    """Single-pass LayerNorm over the last axis (biased variance, f32 math)."""
    n = x.shape[-1]
    s = jnp.sum(x, axis=-1, keepdims=True)
    ss = jnp.sum(x * x, axis=-1, keepdims=True)
    mu = s * (1.0 / n)
    var = jnp.maximum(ss * (1.0 / n) - mu * mu, 0.0)
    return (x - mu) * jax.lax.rsqrt(var + EPS) * gamma + beta


def _choose_tile(n, cap=MAX_ROW_TILE):
    """Largest row tile: <= cap, multiple of 16 (bf16 sublane packing)."""
    t = -(-n // 16) * 16
    return int(max(16, min(cap, t)))


def _pad_rows(x, tile):
    n = x.shape[0]
    n_pad = pl.cdiv(n, tile) * tile
    if n_pad == n:
        return x
    return jnp.pad(x, ((0, n_pad - n), (0, 0)))


def _row_spec(tile, cols):
    return pl.BlockSpec((tile, cols), lambda i: (i, 0))


def _bcast_spec(shape):
    return pl.BlockSpec(shape, lambda i: (0, 0))


# ----------------------------------------------------------------------------
# Pallas kernels
# ----------------------------------------------------------------------------
def _edge_kernel(hi_ref, hj_ref, dist_ref, w_ref, v_ref, msg_ref, scale_ref, *, d):
    """Per-edge message + position-scale MLP.

    hi, hj : (T, d)  bf16 gathered node features (h_i = target, h_j = source)
    dist   : (T, 1)  f32 ||pos_i - pos_j||
    w      : (4d, d) bf16 stacked [wm1_hi ; wm1_hj ; wm2 ; wp1]  (Ref-sliced)
    v      : (12, d) f32 rows: bm1,gm1,btm1,bm2,gm2,btm2,bp1,gp,btp,
                              wm1_dist, wp2^T, bp2(bcast)
    """
    hi = hi_ref[...]
    hj = hj_ref[...]
    dist = dist_ref[...]
    v = v_ref[...]                       # tiny (12, d) slab, ~2 vregs

    # mlp_msg layer 1: split dot over [h_i | h_j | dist]
    z = (jnp.dot(hi, w_ref[0:d, :], preferred_element_type=jnp.float32)
         + jnp.dot(hj, w_ref[d:2 * d, :], preferred_element_type=jnp.float32)
         + dist * v[9:10] + v[0:1])
    z = jnp.maximum(_ln(z, v[1:2], v[2:3]), 0.0)

    # mlp_msg layer 2
    z = jnp.dot(z.astype(COMPUTE_DTYPE), w_ref[2 * d:3 * d, :],
                preferred_element_type=jnp.float32) + v[3:4]
    msg = jnp.maximum(_ln(z, v[4:5], v[5:6]), 0.0)

    # mlp_pos(msg) -> per-edge scalar scale
    p = jnp.dot(msg.astype(COMPUTE_DTYPE), w_ref[3 * d:4 * d, :],
                preferred_element_type=jnp.float32) + v[6:7]
    p = jnp.maximum(_ln(p, v[7:8], v[8:9]), 0.0)
    scale = jnp.sum(p * v[10:11], axis=-1, keepdims=True) + v[11:12][:, 0:1]

    msg_ref[...] = msg.astype(msg_ref.dtype)
    scale_ref[...] = scale


def _node_kernel(h_ref, m_ref, w_ref, v_ref, out_ref, *, d, residual):
    """Per-node update MLP with residual folded into the epilogue.

    h : (T, d) f32 current node features
    m : (T, d) bf16 aggregated messages
    w : (3d, d) bf16 stacked [wu1_h ; wu1_msg ; wu2]  (Ref-sliced)
    v : (6, d)  f32 rows: bu1,gu1,btu1,bu2,gu2,btu2
    """
    h = h_ref[...]
    m = m_ref[...]
    v = v_ref[...]

    z = (jnp.dot(h.astype(COMPUTE_DTYPE), w_ref[0:d, :],
                 preferred_element_type=jnp.float32)
         + jnp.dot(m, w_ref[d:2 * d, :], preferred_element_type=jnp.float32)
         + v[0:1])
    z = jnp.maximum(_ln(z, v[1:2], v[2:3]), 0.0)
    z = jnp.dot(z.astype(COMPUTE_DTYPE), w_ref[2 * d:3 * d, :],
                preferred_element_type=jnp.float32) + v[3:4]
    upd = jnp.maximum(_ln(z, v[4:5], v[5:6]), 0.0)

    out_ref[...] = h + upd if residual else upd


# ----------------------------------------------------------------------------
# pallas_call wrappers
# ----------------------------------------------------------------------------
def edge_message(hi, hj, dist, w_edge, v_edge, d):
    E = hi.shape[0]
    tile = _choose_tile(E)
    hi_p = _pad_rows(hi, tile)
    hj_p = _pad_rows(hj, tile)
    dist_p = _pad_rows(dist, tile)
    Ep = hi_p.shape[0]
    msg, scale = pl.pallas_call(
        functools.partial(_edge_kernel, d=d),
        grid=(Ep // tile,),
        in_specs=[_row_spec(tile, d), _row_spec(tile, d), _row_spec(tile, 1),
                  _bcast_spec(w_edge.shape), _bcast_spec(v_edge.shape)],
        out_specs=(_row_spec(tile, d), _row_spec(tile, 1)),
        out_shape=(jax.ShapeDtypeStruct((Ep, d), COMPUTE_DTYPE),
                   jax.ShapeDtypeStruct((Ep, 1), jnp.float32)),
        compiler_params=pltpu.CompilerParams(
            dimension_semantics=("parallel",),
            vmem_limit_bytes=VMEM_LIMIT),
    )(hi_p, hj_p, dist_p, w_edge, v_edge)
    return msg[:E], scale[:E]


def node_update(h, msg_aggr, w_node, v_node, d, residual):
    N = h.shape[0]
    tile = _choose_tile(N)
    h_p = _pad_rows(h, tile)
    m_p = _pad_rows(msg_aggr, tile)
    Np = h_p.shape[0]
    out = pl.pallas_call(
        functools.partial(_node_kernel, d=d, residual=residual),
        grid=(Np // tile,),
        in_specs=[_row_spec(tile, d), _row_spec(tile, d),
                  _bcast_spec(w_node.shape), _bcast_spec(v_node.shape)],
        out_specs=_row_spec(tile, d),
        out_shape=jax.ShapeDtypeStruct((Np, d), jnp.float32),
        compiler_params=pltpu.CompilerParams(
            dimension_semantics=("parallel",),
            vmem_limit_bytes=VMEM_LIMIT),
    )(h_p, m_p, w_node, v_node)
    return out[:N]


# ----------------------------------------------------------------------------
# parameter init (PyTorch-Linear-style uniform init), packed into kernel slabs
# ----------------------------------------------------------------------------
def _init_linear(key, fan_in, fan_out):
    kw, kb = jax.random.split(key)
    bound = 1.0 / math.sqrt(fan_in)
    w = jax.random.uniform(kw, (fan_in, fan_out), jnp.float32, -bound, bound)
    b = jax.random.uniform(kb, (1, fan_out), jnp.float32, -bound, bound)
    return w, b


def _init_layer(key, d):
    assert d % 8 == 0, "hidden dim must be a multiple of 8 for aligned slab slices"
    keys = jax.random.split(key, 6)
    wm1, bm1 = _init_linear(keys[0], 2 * d + 1, d)     # rows: [h_i | h_j | dist]
    wm2, bm2 = _init_linear(keys[1], d, d)
    wp1, bp1 = _init_linear(keys[2], d, d)
    wp2, bp2 = _init_linear(keys[3], d, 1)
    wu1, bu1 = _init_linear(keys[4], 2 * d, d)
    wu2, bu2 = _init_linear(keys[5], d, d)
    ones = jnp.ones((1, d), jnp.float32)
    zeros = jnp.zeros((1, d), jnp.float32)

    w_edge = jnp.concatenate([wm1[:2 * d], wm2, wp1], axis=0).astype(COMPUTE_DTYPE)
    v_edge = jnp.concatenate(
        [bm1, ones, zeros,                 # LN1 of mlp_msg
         bm2, ones, zeros,                 # LN2 of mlp_msg
         bp1, ones, zeros,                 # LN of mlp_pos
         wm1[2 * d:2 * d + 1],             # dist row of wm1 (kept f32)
         wp2.T,                            # (1, d)
         jnp.broadcast_to(bp2, (1, d))],   # bp2 replicated
        axis=0)                                                          # (12, d)
    w_node = jnp.concatenate([wu1, wu2], axis=0).astype(COMPUTE_DTYPE)   # (3d, d)
    v_node = jnp.concatenate([bu1, ones, zeros, bu2, ones, zeros], axis=0)  # (6, d)
    return dict(W_edge=w_edge, V_edge=v_edge, W_node=w_node, V_node=v_node)


def init_params(key, depth, hidden, node_features, out_features):
    keys = jax.random.split(key, depth + 3)
    emb_w, emb_b = _init_linear(keys[0], node_features, hidden)
    layers = [_init_layer(keys[i + 1], hidden) for i in range(depth)]
    pw1, pb1 = _init_linear(keys[depth + 1], hidden, hidden)
    pw2, pb2 = _init_linear(keys[depth + 2], hidden, out_features)
    return dict(emb_w=emb_w, emb_b=emb_b, layers=layers,
                pred_w1=pw1, pred_b1=pb1, pred_w2=pw2, pred_b2=pb2)


# ----------------------------------------------------------------------------
# graph preprocessing (hoisted out of the jitted forward; static-graph work)
# ----------------------------------------------------------------------------
def preprocess_graph(edge_index, num_nodes):
    """Sort edges by target node and compute inverse target degree once."""
    src, dst = edge_index[0], edge_index[1]           # j = source, i = target
    order = jnp.argsort(dst)
    src, dst = src[order], dst[order]
    cnt = jax.ops.segment_sum(jnp.ones(dst.shape, jnp.float32), dst,
                              num_segments=num_nodes, indices_are_sorted=True)
    inv_cnt = (1.0 / jnp.maximum(cnt, 1.0))[:, None]
    return src, dst, inv_cnt


# ----------------------------------------------------------------------------
# full model forward (EGNN_Full: residual=True, aggr='sum', pool='add',
# activation='relu', norm='layer')
# ----------------------------------------------------------------------------
def egnn_full_forward(params, x, pos, src, dst, inv_cnt, batch,
                      num_graphs, residual=True):
    d = params['pred_w1'].shape[0]                    # hidden dim (static)
    N = x.shape[0]

    # emb_in: tiny (node_features -> d) linear, left to XLA.
    h = x @ params['emb_w'] + params['emb_b']

    for lp in params['layers']:
        # gather glue (plain JAX): bf16 feature gathers + pos diff / dist
        h_bf = h.astype(COMPUTE_DTYPE)
        hi = h_bf[dst]                                 # (E, d)  h_i (target)
        hj = h_bf[src]                                 # (E, d)  h_j (source)
        pd = pos[dst] - pos[src]                       # (E, 3)  stays in XLA
        dist = jnp.sqrt(jnp.sum(pd * pd, axis=-1, keepdims=True))  # (E, 1)

        msg, scale = edge_message(hi, hj, dist, lp['W_edge'], lp['V_edge'], d)

        # aggregate: sum for messages, mean for scaled position diffs
        msg_aggr = jax.ops.segment_sum(msg, dst, num_segments=N,
                                       indices_are_sorted=True)
        pos_aggr = jax.ops.segment_sum(pd * scale, dst, num_segments=N,
                                       indices_are_sorted=True) * inv_cnt

        h = node_update(h, msg_aggr, lp['W_node'], lp['V_node'], d, residual)
        pos = pos + pos_aggr

    # global_add_pool + pred MLP (tiny, left to XLA)
    pooled = jax.ops.segment_sum(h, batch, num_segments=num_graphs)
    z = jnp.maximum(pooled @ params['pred_w1'] + params['pred_b1'], 0.0)
    return z @ params['pred_w2'] + params['pred_b2']


# ----------------------------------------------------------------------------
if __name__ == "__main__":
    key = jax.random.PRNGKey(0)
    depth, hidden, node_features, out_features = 3, 128, 1, 1
    n_per_graph, num_graphs = 4, 2
    N = n_per_graph * num_graphs

    kx, kp, kparams = jax.random.split(key, 3)
    x = jax.random.normal(kx, (N, node_features), jnp.float32)
    pos = jax.random.normal(kp, (N, 3), jnp.float32)

    # bidirectional ring inside each graph -> E = 2 * n_per_graph * num_graphs
    srcs, dsts = [], []
    for g in range(num_graphs):
        base = g * n_per_graph
        for v in range(n_per_graph):
            u = base + v
            w = base + (v + 1) % n_per_graph
            srcs += [u, w]
            dsts += [w, u]
    edge_index = jnp.array([srcs, dsts], dtype=jnp.int32)   # (2, 16)
    batch = jnp.repeat(jnp.arange(num_graphs, dtype=jnp.int32), n_per_graph)

    params = init_params(kparams, depth, hidden, node_features, out_features)

    # hoisted, once-per-graph preprocessing (not re-run every forward)
    src_s, dst_s, inv_cnt = preprocess_graph(edge_index, N)

    fwd = jax.jit(functools.partial(egnn_full_forward, num_graphs=num_graphs))
    out = fwd(params, x, pos, src_s, dst_s, inv_cnt, batch)
    jax.block_until_ready(out)

    assert out.shape == (num_graphs, out_features), out.shape
    assert bool(jnp.all(jnp.isfinite(out)))
    print("KERNEL_OK")
</pallas_src>

<mosaic_0001>
module attributes {stable_mosaic.version = 11 : i64} {
  func.func @_edge_kernel(%arg0: i32, %arg1: memref<16x128xbf16, #tpu.memory_space<vmem>>, %arg2: memref<16x128xbf16, #tpu.memory_space<vmem>>, %arg3: memref<16x1xf32, #tpu.memory_space<vmem>>, %arg4: memref<512x128xbf16, #tpu.memory_space<vmem>>, %arg5: memref<12x128xf32, #tpu.memory_space<vmem>>, %arg6: memref<16x128xbf16, #tpu.memory_space<vmem>>, %arg7: memref<16x1xf32, #tpu.memory_space<vmem>>) attributes {dimension_semantics = [#tpu.dimension_semantics<parallel>], iteration_bounds = array<i64: 1>, scalar_prefetch = 0 : i64, scratch_operands = 0 : i64, tpu.core_type = #tpu.core_type<tc>, window_params = [{transform_indices = @transform_0, window_bounds = array<i64: 16, 128>}, {transform_indices = @transform_1, window_bounds = array<i64: 16, 128>}, {transform_indices = @transform_2, window_bounds = array<i64: 16, 1>}, {pipeline_mode = #tpu.pipeline_mode<synchronous>, transform_indices = @transform_3, window_bounds = array<i64: 512, 128>}, {pipeline_mode = #tpu.pipeline_mode<synchronous>, transform_indices = @transform_4, window_bounds = array<i64: 12, 128>}, {transform_indices = @transform_5, window_bounds = array<i64: 16, 128>}, {transform_indices = @transform_6, window_bounds = array<i64: 16, 1>}]} {
    %c0 = arith.constant 0 : index
    %c0_0 = arith.constant 0 : index
    %0 = vector.load %arg1[%c0, %c0_0] : memref<16x128xbf16, #tpu.memory_space<vmem>>, vector<16x128xbf16>
    %c0_1 = arith.constant 0 : index
    %c0_2 = arith.constant 0 : index
    %1 = vector.load %arg2[%c0_1, %c0_2] : memref<16x128xbf16, #tpu.memory_space<vmem>>, vector<16x128xbf16>
    %c0_3 = arith.constant 0 : index
    %c0_4 = arith.constant 0 : index
    %2 = vector.load %arg3[%c0_3, %c0_4] : memref<16x1xf32, #tpu.memory_space<vmem>>, vector<16x1xf32>
    %c0_5 = arith.constant 0 : index
    %c0_6 = arith.constant 0 : index
    %3 = vector.load %arg5[%c0_5, %c0_6] : memref<12x128xf32, #tpu.memory_space<vmem>>, vector<12x128xf32>
    %c0_7 = arith.constant 0 : index
    %c0_8 = arith.constant 0 : index
    %4 = vector.load %arg4[%c0_7, %c0_8] : memref<512x128xbf16, #tpu.memory_space<vmem>>, vector<128x128xbf16>
    %cst = arith.constant dense<0.000000e+00> : vector<16x128xf32>
    %5 = tpu.matmul %0, %4, %cst {dimension_numbers = #tpu.dot_dimension_numbers<[1], [0], [0], [1], [0, 0, 1, 1], [], []>} : vector<16x128xbf16>, vector<128x128xbf16>, vector<16x128xf32> -> vector<16x128xf32>
    %c128 = arith.constant 128 : index
    %c0_9 = arith.constant 0 : index
    %6 = vector.load %arg4[%c128, %c0_9] : memref<512x128xbf16, #tpu.memory_space<vmem>>, vector<128x128xbf16>
    %cst_10 = arith.constant dense<0.000000e+00> : vector<16x128xf32>
    %7 = tpu.matmul %1, %6, %cst_10 {dimension_numbers = #tpu.dot_dimension_numbers<[1], [0], [0], [1], [0, 0, 1, 1], [], []>} : vector<16x128xbf16>, vector<128x128xbf16>, vector<16x128xf32> -> vector<16x128xf32>
    %8 = arith.addf %5, %7 : vector<16x128xf32>
    %9 = vector.extract_strided_slice %3 {offsets = [9, 0], sizes = [1, 128], strides = [1, 1]} : vector<12x128xf32> to vector<1x128xf32>
    %10 = vector.broadcast %2 : vector<16x1xf32> to vector<16x128xf32>
    %11 = vector.broadcast %9 : vector<1x128xf32> to vector<16x128xf32>
    %12 = arith.mulf %10, %11 : vector<16x128xf32>
    %13 = arith.addf %8, %12 : vector<16x128xf32>
    %14 = vector.extract_strided_slice %3 {offsets = [0, 0], sizes = [1, 128], strides = [1, 1]} : vector<12x128xf32> to vector<1x128xf32>
    %15 = vector.broadcast %14 : vector<1x128xf32> to vector<16x128xf32>
    %16 = arith.addf %13, %15 : vector<16x128xf32>
    %17 = vector.extract_strided_slice %3 {offsets = [1, 0], sizes = [1, 128], strides = [1, 1]} : vector<12x128xf32> to vector<1x128xf32>
    %18 = vector.extract_strided_slice %3 {offsets = [2, 0], sizes = [1, 128], strides = [1, 1]} : vector<12x128xf32> to vector<1x128xf32>
    %cst_11 = arith.constant dense<0.000000e+00> : vector<16xf32>
    %19 = vector.multi_reduction <add>, %16, %cst_11 [1] : vector<16x128xf32> to vector<16xf32>
    %20 = vector.shape_cast %19 : vector<16xf32> to vector<16x1xf32>
    %21 = arith.mulf %16, %16 : vector<16x128xf32>
    %cst_12 = arith.constant dense<0.000000e+00> : vector<16xf32>
    %22 = vector.multi_reduction <add>, %21, %cst_12 [1] : vector<16x128xf32> to vector<16xf32>
    %23 = vector.shape_cast %22 : vector<16xf32> to vector<16x1xf32>
    %cst_13 = arith.constant 7.812500e-03 : f32
    %24 = vector.broadcast %cst_13 : f32 to vector<16x1xf32>
    %25 = arith.mulf %20, %24 : vector<16x1xf32>
    %cst_14 = arith.constant 7.812500e-03 : f32
    %26 = vector.broadcast %cst_14 : f32 to vector<16x1xf32>
    %27 = arith.mulf %23, %26 : vector<16x1xf32>
    %28 = arith.mulf %25, %25 : vector<16x1xf32>
    %29 = arith.subf %27, %28 : vector<16x1xf32>
    %cst_15 = arith.constant 0.000000e+00 : f32
    %30 = vector.broadcast %cst_15 : f32 to vector<16x1xf32>
    %31 = arith.maximumf %29, %30 : vector<16x1xf32>
    %32 = vector.broadcast %25 : vector<16x1xf32> to vector<16x128xf32>
    %33 = arith.subf %16, %32 : vector<16x128xf32>
    %cst_16 = arith.constant 9.99999974E-6 : f32
    %34 = vector.broadcast %cst_16 : f32 to vector<16x1xf32>
    %35 = arith.addf %31, %34 : vector<16x1xf32>
    %36 = math.rsqrt %35 : vector<16x1xf32>
    %37 = vector.broadcast %36 : vector<16x1xf32> to vector<16x128xf32>
    %38 = arith.mulf %33, %37 : vector<16x128xf32>
    %39 = vector.broadcast %17 : vector<1x128xf32> to vector<16x128xf32>
    %40 = arith.mulf %38, %39 : vector<16x128xf32>
    %41 = vector.broadcast %18 : vector<1x128xf32> to vector<16x128xf32>
    %42 = arith.addf %40, %41 : vector<16x128xf32>
    %cst_17 = arith.constant 0.000000e+00 : f32
    %43 = vector.broadcast %cst_17 : f32 to vector<16x128xf32>
    %44 = arith.maximumf %42, %43 : vector<16x128xf32>
    %45 = arith.truncf %44 : vector<16x128xf32> to vector<16x128xbf16>
    %c256 = arith.constant 256 : index
    %c0_18 = arith.constant 0 : index
    %46 = vector.load %arg4[%c256, %c0_18] : memref<512x128xbf16, #tpu.memory_space<vmem>>, vector<128x128xbf16>
    %cst_19 = arith.constant dense<0.000000e+00> : vector<16x128xf32>
    %47 = tpu.matmul %45, %46, %cst_19 {dimension_numbers = #tpu.dot_dimension_numbers<[1], [0], [0], [1], [0, 0, 1, 1], [], []>} : vector<16x128xbf16>, vector<128x128xbf16>, vector<16x128xf32> -> vector<16x128xf32>
    %48 = vector.extract_strided_slice %3 {offsets = [3, 0], sizes = [1, 128], strides = [1, 1]} : vector<12x128xf32> to vector<1x128xf32>
    %49 = vector.broadcast %48 : vector<1x128xf32> to vector<16x128xf32>
    %50 = arith.addf %47, %49 : vector<16x128xf32>
    %51 = vector.extract_strided_slice %3 {offsets = [4, 0], sizes = [1, 128], strides = [1, 1]} : vector<12x128xf32> to vector<1x128xf32>
    %52 = vector.extract_strided_slice %3 {offsets = [5, 0], sizes = [1, 128], strides = [1, 1]} : vector<12x128xf32> to vector<1x128xf32>
    %cst_20 = arith.constant dense<0.000000e+00> : vector<16xf32>
    %53 = vector.multi_reduction <add>, %50, %cst_20 [1] : vector<16x128xf32> to vector<16xf32>
    %54 = vector.shape_cast %53 : vector<16xf32> to vector<16x1xf32>
    %55 = arith.mulf %50, %50 : vector<16x128xf32>
    %cst_21 = arith.constant dense<0.000000e+00> : vector<16xf32>
    %56 = vector.multi_reduction <add>, %55, %cst_21 [1] : vector<16x128xf32> to vector<16xf32>
    %57 = vector.shape_cast %56 : vector<16xf32> to vector<16x1xf32>
    %cst_22 = arith.constant 7.812500e-03 : f32
    %58 = vector.broadcast %cst_22 : f32 to vector<16x1xf32>
    %59 = arith.mulf %54, %58 : vector<16x1xf32>
    %cst_23 = arith.constant 7.812500e-03 : f32
    %60 = vector.broadcast %cst_23 : f32 to vector<16x1xf32>
    %61 = arith.mulf %57, %60 : vector<16x1xf32>
    %62 = arith.mulf %59, %59 : vector<16x1xf32>
    %63 = arith.subf %61, %62 : vector<16x1xf32>
    %cst_24 = arith.constant 0.000000e+00 : f32
    %64 = vector.broadcast %cst_24 : f32 to vector<16x1xf32>
    %65 = arith.maximumf %63, %64 : vector<16x1xf32>
    %66 = vector.broadcast %59 : vector<16x1xf32> to vector<16x128xf32>
    %67 = arith.subf %50, %66 : vector<16x128xf32>
    %cst_25 = arith.constant 9.99999974E-6 : f32
    %68 = vector.broadcast %cst_25 : f32 to vector<16x1xf32>
    %69 = arith.addf %65, %68 : vector<16x1xf32>
    %70 = math.rsqrt %69 : vector<16x1xf32>
    %71 = vector.broadcast %70 : vector<16x1xf32> to vector<16x128xf32>
    %72 = arith.mulf %67, %71 : vector<16x128xf32>
    %73 = vector.broadcast %51 : vector<1x128xf32> to vector<16x128xf32>
    %74 = arith.mulf %72, %73 : vector<16x128xf32>
    %75 = vector.broadcast %52 : vector<1x128xf32> to vector<16x128xf32>
    %76 = arith.addf %74, %75 : vector<16x128xf32>
    %cst_26 = arith.constant 0.000000e+00 : f32
    %77 = vector.broadcast %cst_26 : f32 to vector<16x128xf32>
    %78 = arith.maximumf %76, %77 : vector<16x128xf32>
    %79 = arith.truncf %78 : vector<16x128xf32> to vector<16x128xbf16>
    %c384 = arith.constant 384 : index
    %c0_27 = arith.constant 0 : index
    %80 = vector.load %arg4[%c384, %c0_27] : memref<512x128xbf16, #tpu.memory_space<vmem>>, vector<128x128xbf16>
    %cst_28 = arith.constant dense<0.000000e+00> : vector<16x128xf32>
    %81 = tpu.matmul %79, %80, %cst_28 {dimension_numbers = #tpu.dot_dimension_numbers<[1], [0], [0], [1], [0, 0, 1, 1], [], []>} : vector<16x128xbf16>, vector<128x128xbf16>, vector<16x128xf32> -> vector<16x128xf32>
    %82 = vector.extract_strided_slice %3 {offsets = [6, 0], sizes = [1, 128], strides = [1, 1]} : vector<12x128xf32> to vector<1x128xf32>
    %83 = vector.broadcast %82 : vector<1x128xf32> to vector<16x128xf32>
    %84 = arith.addf %81, %83 : vector<16x128xf32>
    %85 = vector.extract_strided_slice %3 {offsets = [7, 0], sizes = [1, 128], strides = [1, 1]} : vector<12x128xf32> to vector<1x128xf32>
    %86 = vector.extract_strided_slice %3 {offsets = [8, 0], sizes = [1, 128], strides = [1, 1]} : vector<12x128xf32> to vector<1x128xf32>
    %cst_29 = arith.constant dense<0.000000e+00> : vector<16xf32>
    %87 = vector.multi_reduction <add>, %84, %cst_29 [1] : vector<16x128xf32> to vector<16xf32>
    %88 = vector.shape_cast %87 : vector<16xf32> to vector<16x1xf32>
    %89 = arith.mulf %84, %84 : vector<16x128xf32>
    %cst_30 = arith.constant dense<0.000000e+00> : vector<16xf32>
    %90 = vector.multi_reduction <add>, %89, %cst_30 [1] : vector<16x128xf32> to vector<16xf32>
    %91 = vector.shape_cast %90 : vector<16xf32> to vector<16x1xf32>
    %cst_31 = arith.constant 7.812500e-03 : f32
    %92 = vector.broadcast %cst_31 : f32 to vector<16x1xf32>
    %93 = arith.mulf %88, %92 : vector<16x1xf32>
    %cst_32 = arith.constant 7.812500e-03 : f32
    %94 = vector.broadcast %cst_32 : f32 to vector<16x1xf32>
    %95 = arith.mulf %91, %94 : vector<16x1xf32>
    %96 = arith.mulf %93, %93 : vector<16x1xf32>
    %97 = arith.subf %95, %96 : vector<16x1xf32>
    %cst_33 = arith.constant 0.000000e+00 : f32
    %98 = vector.broadcast %cst_33 : f32 to vector<16x1xf32>
    %99 = arith.maximumf %97, %98 : vector<16x1xf32>
    %100 = vector.broadcast %93 : vector<16x1xf32> to vector<16x128xf32>
    %101 = arith.subf %84, %100 : vector<16x128xf32>
    %cst_34 = arith.constant 9.99999974E-6 : f32
    %102 = vector.broadcast %cst_34 : f32 to vector<16x1xf32>
    %103 = arith.addf %99, %102 : vector<16x1xf32>
    %104 = math.rsqrt %103 : vector<16x1xf32>
    %105 = vector.broadcast %104 : vector<16x1xf32> to vector<16x128xf32>
    %106 = arith.mulf %101, %105 : vector<16x128xf32>
    %107 = vector.broadcast %85 : vector<1x128xf32> to vector<16x128xf32>
    %108 = arith.mulf %106, %107 : vector<16x128xf32>
    %109 = vector.broadcast %86 : vector<1x128xf32> to vector<16x128xf32>
    %110 = arith.addf %108, %109 : vector<16x128xf32>
    %cst_35 = arith.constant 0.000000e+00 : f32
    %111 = vector.broadcast %cst_35 : f32 to vector<16x128xf32>
    %112 = arith.maximumf %110, %111 : vector<16x128xf32>
    %113 = vector.extract_strided_slice %3 {offsets = [10, 0], sizes = [1, 128], strides = [1, 1]} : vector<12x128xf32> to vector<1x128xf32>
    %114 = vector.broadcast %113 : vector<1x128xf32> to vector<16x128xf32>
    %115 = arith.mulf %112, %114 : vector<16x128xf32>
    %cst_36 = arith.constant dense<0.000000e+00> : vector<16xf32>
    %116 = vector.multi_reduction <add>, %115, %cst_36 [1] : vector<16x128xf32> to vector<16xf32>
    %117 = vector.shape_cast %116 : vector<16xf32> to vector<16x1xf32>
    %118 = vector.extract_strided_slice %3 {offsets = [11, 0], sizes = [1, 128], strides = [1, 1]} : vector<12x128xf32> to vector<1x128xf32>
    %119 = vector.extract_strided_slice %118 {offsets = [0, 0], sizes = [1, 1], strides = [1, 1]} : vector<1x128xf32> to vector<1x1xf32>
    %120 = vector.broadcast %119 : vector<1x1xf32> to vector<16x1xf32>
    %121 = arith.addf %117, %120 : vector<16x1xf32>
    %122 = arith.truncf %78 : vector<16x128xf32> to vector<16x128xbf16>
    %c0_37 = arith.constant 0 : index
    %c0_38 = arith.constant 0 : index
    %123 = vector.load %arg6[%c0_37, %c0_38] : memref<16x128xbf16, #tpu.memory_space<vmem>>, vector<16x128xbf16>
    tpu.vector_store %arg6[%c0_37, %c0_38], %122 {strides = array<i32>} : memref<16x128xbf16, #tpu.memory_space<vmem>>, vector<16x128xbf16>,
    %c0_39 = arith.constant 0 : index
    %c0_40 = arith.constant 0 : index
    %124 = vector.load %arg7[%c0_39, %c0_40] : memref<16x1xf32, #tpu.memory_space<vmem>>, vector<16x1xf32>
    tpu.vector_store %arg7[%c0_39, %c0_40], %121 {strides = array<i32>} : memref<16x1xf32, #tpu.memory_space<vmem>>, vector<16x1xf32>,
    return
  }
  func.func @transform_0(%arg0: i32) -> (i32, i32) {
    %c0_i32 = arith.constant 0 : i32
    %c0_i32_0 = arith.constant 0 : i32
    return %arg0, %c0_i32 : i32, i32
  }
  func.func @transform_1(%arg0: i32) -> (i32, i32) {
    %c0_i32 = arith.constant 0 : i32
    %c0_i32_0 = arith.constant 0 : i32
    return %arg0, %c0_i32 : i32, i32
  }
  func.func @transform_2(%arg0: i32) -> (i32, i32) {
    %c0_i32 = arith.constant 0 : i32
    %c0_i32_0 = arith.constant 0 : i32
    return %arg0, %c0_i32 : i32, i32
  }
  func.func @transform_3(%arg0: i32) -> (i32, i32) {
    %c0_i32 = arith.constant 0 : i32
    %c0_i32_0 = arith.constant 0 : i32
    %c0_i32_1 = arith.constant 0 : i32
    return %c0_i32, %c0_i32_0 : i32, i32
  }
  func.func @transform_4(%arg0: i32) -> (i32, i32) {
    %c0_i32 = arith.constant 0 : i32
    %c0_i32_0 = arith.constant 0 : i32
    %c0_i32_1 = arith.constant 0 : i32
    return %c0_i32, %c0_i32_0 : i32, i32
  }
  func.func @transform_5(%arg0: i32) -> (i32, i32) {
    %c0_i32 = arith.constant 0 : i32
    %c0_i32_0 = arith.constant 0 : i32
    return %arg0, %c0_i32 : i32, i32
  }
  func.func @transform_6(%arg0: i32) -> (i32, i32) {
    %c0_i32 = arith.constant 0 : i32
    %c0_i32_0 = arith.constant 0 : i32
    return %arg0, %c0_i32 : i32, i32
  }
}

module attributes {stable_mosaic.version = 11 : i64} {
  func.func @_node_kernel(%arg0: i32, %arg1: memref<16x128xf32, #tpu.memory_space<vmem>>, %arg2: memref<16x128xbf16, #tpu.memory_space<vmem>>, %arg3: memref<384x128xbf16, #tpu.memory_space<vmem>>, %arg4: memref<6x128xf32, #tpu.memory_space<vmem>>, %arg5: memref<16x128xf32, #tpu.memory_space<vmem>>) attributes {dimension_semantics = [#tpu.dimension_semantics<parallel>], iteration_bounds = array<i64: 1>, scalar_prefetch = 0 : i64, scratch_operands = 0 : i64, tpu.core_type = #tpu.core_type<tc>, window_params = [{transform_indices = @transform_0, window_bounds = array<i64: 16, 128>}, {transform_indices = @transform_1, window_bounds = array<i64: 16, 128>}, {pipeline_mode = #tpu.pipeline_mode<synchronous>, transform_indices = @transform_2, window_bounds = array<i64: 384, 128>}, {pipeline_mode = #tpu.pipeline_mode<synchronous>, transform_indices = @transform_3, window_bounds = array<i64: 6, 128>}, {transform_indices = @transform_4, window_bounds = array<i64: 16, 128>}]} {
    %c0 = arith.constant 0 : index
    %c0_0 = arith.constant 0 : index
    %0 = vector.load %arg1[%c0, %c0_0] : memref<16x128xf32, #tpu.memory_space<vmem>>, vector<16x128xf32>
    %c0_1 = arith.constant 0 : index
    %c0_2 = arith.constant 0 : index
    %1 = vector.load %arg2[%c0_1, %c0_2] : memref<16x128xbf16, #tpu.memory_space<vmem>>, vector<16x128xbf16>
    %c0_3 = arith.constant 0 : index
    %c0_4 = arith.constant 0 : index
    %2 = vector.load %arg4[%c0_3, %c0_4] : memref<6x128xf32, #tpu.memory_space<vmem>>, vector<6x128xf32>
    %3 = arith.truncf %0 : vector<16x128xf32> to vector<16x128xbf16>
    %c0_5 = arith.constant 0 : index
    %c0_6 = arith.constant 0 : index
    %4 = vector.load %arg3[%c0_5, %c0_6] : memref<384x128xbf16, #tpu.memory_space<vmem>>, vector<128x128xbf16>
    %cst = arith.constant dense<0.000000e+00> : vector<16x128xf32>
    %5 = tpu.matmul %3, %4, %cst {dimension_numbers = #tpu.dot_dimension_numbers<[1], [0], [0], [1], [0, 0, 1, 1], [], []>} : vector<16x128xbf16>, vector<128x128xbf16>, vector<16x128xf32> -> vector<16x128xf32>
    %c128 = arith.constant 128 : index
    %c0_7 = arith.constant 0 : index
    %6 = vector.load %arg3[%c128, %c0_7] : memref<384x128xbf16, #tpu.memory_space<vmem>>, vector<128x128xbf16>
    %cst_8 = arith.constant dense<0.000000e+00> : vector<16x128xf32>
    %7 = tpu.matmul %1, %6, %cst_8 {dimension_numbers = #tpu.dot_dimension_numbers<[1], [0], [0], [1], [0, 0, 1, 1], [], []>} : vector<16x128xbf16>, vector<128x128xbf16>, vector<16x128xf32> -> vector<16x128xf32>
    %8 = arith.addf %5, %7 : vector<16x128xf32>
    %9 = vector.extract_strided_slice %2 {offsets = [0, 0], sizes = [1, 128], strides = [1, 1]} : vector<6x128xf32> to vector<1x128xf32>
    %10 = vector.broadcast %9 : vector<1x128xf32> to vector<16x128xf32>
    %11 = arith.addf %8, %10 : vector<16x128xf32>
    %12 = vector.extract_strided_slice %2 {offsets = [1, 0], sizes = [1, 128], strides = [1, 1]} : vector<6x128xf32> to vector<1x128xf32>
    %13 = vector.extract_strided_slice %2 {offsets = [2, 0], sizes = [1, 128], strides = [1, 1]} : vector<6x128xf32> to vector<1x128xf32>
    %cst_9 = arith.constant dense<0.000000e+00> : vector<16xf32>
    %14 = vector.multi_reduction <add>, %11, %cst_9 [1] : vector<16x128xf32> to vector<16xf32>
    %15 = vector.shape_cast %14 : vector<16xf32> to vector<16x1xf32>
    %16 = arith.mulf %11, %11 : vector<16x128xf32>
    %cst_10 = arith.constant dense<0.000000e+00> : vector<16xf32>
    %17 = vector.multi_reduction <add>, %16, %cst_10 [1] : vector<16x128xf32> to vector<16xf32>
    %18 = vector.shape_cast %17 : vector<16xf32> to vector<16x1xf32>
    %cst_11 = arith.constant 7.812500e-03 : f32
    %19 = vector.broadcast %cst_11 : f32 to vector<16x1xf32>
    %20 = arith.mulf %15, %19 : vector<16x1xf32>
    %cst_12 = arith.constant 7.812500e-03 : f32
    %21 = vector.broadcast %cst_12 : f32 to vector<16x1xf32>
    %22 = arith.mulf %18, %21 : vector<16x1xf32>
    %23 = arith.mulf %20, %20 : vector<16x1xf32>
    %24 = arith.subf %22, %23 : vector<16x1xf32>
    %cst_13 = arith.constant 0.000000e+00 : f32
    %25 = vector.broadcast %cst_13 : f32 to vector<16x1xf32>
    %26 = arith.maximumf %24, %25 : vector<16x1xf32>
    %27 = vector.broadcast %20 : vector<16x1xf32> to vector<16x128xf32>
    %28 = arith.subf %11, %27 : vector<16x128xf32>
    %cst_14 = arith.constant 9.99999974E-6 : f32
    %29 = vector.broadcast %cst_14 : f32 to vector<16x1xf32>
    %30 = arith.addf %26, %29 : vector<16x1xf32>
    %31 = math.rsqrt %30 : vector<16x1xf32>
    %32 = vector.broadcast %31 : vector<16x1xf32> to vector<16x128xf32>
    %33 = arith.mulf %28, %32 : vector<16x128xf32>
    %34 = vector.broadcast %12 : vector<1x128xf32> to vector<16x128xf32>
    %35 = arith.mulf %33, %34 : vector<16x128xf32>
    %36 = vector.broadcast %13 : vector<1x128xf32> to vector<16x128xf32>
    %37 = arith.addf %35, %36 : vector<16x128xf32>
    %cst_15 = arith.constant 0.000000e+00 : f32
    %38 = vector.broadcast %cst_15 : f32 to vector<16x128xf32>
    %39 = arith.maximumf %37, %38 : vector<16x128xf32>
    %40 = arith.truncf %39 : vector<16x128xf32> to vector<16x128xbf16>
    %c256 = arith.constant 256 : index
    %c0_16 = arith.constant 0 : index
    %41 = vector.load %arg3[%c256, %c0_16] : memref<384x128xbf16, #tpu.memory_space<vmem>>, vector<128x128xbf16>
    %cst_17 = arith.constant dense<0.000000e+00> : vector<16x128xf32>
    %42 = tpu.matmul %40, %41, %cst_17 {dimension_numbers = #tpu.dot_dimension_numbers<[1], [0], [0], [1], [0, 0, 1, 1], [], []>} : vector<16x128xbf16>, vector<128x128xbf16>, vector<16x128xf32> -> vector<16x128xf32>
    %43 = vector.extract_strided_slice %2 {offsets = [3, 0], sizes = [1, 128], strides = [1, 1]} : vector<6x128xf32> to vector<1x128xf32>
    %44 = vector.broadcast %43 : vector<1x128xf32> to vector<16x128xf32>
    %45 = arith.addf %42, %44 : vector<16x128xf32>
    %46 = vector.extract_strided_slice %2 {offsets = [4, 0], sizes = [1, 128], strides = [1, 1]} : vector<6x128xf32> to vector<1x128xf32>
    %47 = vector.extract_strided_slice %2 {offsets = [5, 0], sizes = [1, 128], strides = [1, 1]} : vector<6x128xf32> to vector<1x128xf32>
    %cst_18 = arith.constant dense<0.000000e+00> : vector<16xf32>
    %48 = vector.multi_reduction <add>, %45, %cst_18 [1] : vector<16x128xf32> to vector<16xf32>
    %49 = vector.shape_cast %48 : vector<16xf32> to vector<16x1xf32>
    %50 = arith.mulf %45, %45 : vector<16x128xf32>
    %cst_19 = arith.constant dense<0.000000e+00> : vector<16xf32>
    %51 = vector.multi_reduction <add>, %50, %cst_19 [1] : vector<16x128xf32> to vector<16xf32>
    %52 = vector.shape_cast %51 : vector<16xf32> to vector<16x1xf32>
    %cst_20 = arith.constant 7.812500e-03 : f32
    %53 = vector.broadcast %cst_20 : f32 to vector<16x1xf32>
    %54 = arith.mulf %49, %53 : vector<16x1xf32>
    %cst_21 = arith.constant 7.812500e-03 : f32
    %55 = vector.broadcast %cst_21 : f32 to vector<16x1xf32>
    %56 = arith.mulf %52, %55 : vector<16x1xf32>
    %57 = arith.mulf %54, %54 : vector<16x1xf32>
    %58 = arith.subf %56, %57 : vector<16x1xf32>
    %cst_22 = arith.constant 0.000000e+00 : f32
    %59 = vector.broadcast %cst_22 : f32 to vector<16x1xf32>
    %60 = arith.maximumf %58, %59 : vector<16x1xf32>
    %61 = vector.broadcast %54 : vector<16x1xf32> to vector<16x128xf32>
    %62 = arith.subf %45, %61 : vector<16x128xf32>
    %cst_23 = arith.constant 9.99999974E-6 : f32
    %63 = vector.broadcast %cst_23 : f32 to vector<16x1xf32>
    %64 = arith.addf %60, %63 : vector<16x1xf32>
    %65 = math.rsqrt %64 : vector<16x1xf32>
    %66 = vector.broadcast %65 : vector<16x1xf32> to vector<16x128xf32>
    %67 = arith.mulf %62, %66 : vector<16x128xf32>
    %68 = vector.broadcast %46 : vector<1x128xf32> to vector<16x128xf32>
    %69 = arith.mulf %67, %68 : vector<16x128xf32>
    %70 = vector.broadcast %47 : vector<1x128xf32> to vector<16x128xf32>
    %71 = arith.addf %69, %70 : vector<16x128xf32>
    %cst_24 = arith.constant 0.000000e+00 : f32
    %72 = vector.broadcast %cst_24 : f32 to vector<16x128xf32>
    %73 = arith.maximumf %71, %72 : vector<16x128xf32>
    %74 = arith.addf %0, %73 : vector<16x128xf32>
    %c0_25 = arith.constant 0 : index
    %c0_26 = arith.constant 0 : index
    %75 = vector.load %arg5[%c0_25, %c0_26] : memref<16x128xf32, #tpu.memory_space<vmem>>, vector<16x128xf32>
    tpu.vector_store %arg5[%c0_25, %c0_26], %74 {strides = array<i32>} : memref<16x128xf32, #tpu.memory_space<vmem>>, vector<16x128xf32>,
    return
  }
  func.func @transform_0(%arg0: i32) -> (i32, i32) {
    %c0_i32 = arith.constant 0 : i32
    %c0_i32_0 = arith.constant 0 : i32
    return %arg0, %c0_i32 : i32, i32
  }
  func.func @transform_1(%arg0: i32) -> (i32, i32) {
    %c0_i32 = arith.constant 0 : i32
    %c0_i32_0 = arith.constant 0 : i32
    return %arg0, %c0_i32 : i32, i32
  }
  func.func @transform_2(%arg0: i32) -> (i32, i32) {
    %c0_i32 = arith.constant 0 : i32
    %c0_i32_0 = arith.constant 0 : i32
    %c0_i32_1 = arith.constant 0 : i32
    return %c0_i32, %c0_i32_0 : i32, i32
  }
  func.func @transform_3(%arg0: i32) -> (i32, i32) {
    %c0_i32 = arith.constant 0 : i32
    %c0_i32_0 = arith.constant 0 : i32
    %c0_i32_1 = arith.constant 0 : i32
    return %c0_i32, %c0_i32_0 : i32, i32
  }
  func.func @transform_4(%arg0: i32) -> (i32, i32) {
    %c0_i32 = arith.constant 0 : i32
    %c0_i32_0 = arith.constant 0 : i32
    return %arg0, %c0_i32 : i32, i32
  }
}

module attributes {stable_mosaic.version = 11 : i64} {
  func.func @_edge_kernel(%arg0: i32, %arg1: memref<16x128xbf16, #tpu.memory_space<vmem>>, %arg2: memref<16x128xbf16, #tpu.memory_space<vmem>>, %arg3: memref<16x1xf32, #tpu.memory_space<vmem>>, %arg4: memref<512x128xbf16, #tpu.memory_space<vmem>>, %arg5: memref<12x128xf32, #tpu.memory_space<vmem>>, %arg6: memref<16x128xbf16, #tpu.memory_space<vmem>>, %arg7: memref<16x1xf32, #tpu.memory_space<vmem>>) attributes {dimension_semantics = [#tpu.dimension_semantics<parallel>], iteration_bounds = array<i64: 1>, scalar_prefetch = 0 : i64, scratch_operands = 0 : i64, tpu.core_type = #tpu.core_type<tc>, window_params = [{transform_indices = @transform_0, window_bounds = array<i64: 16, 128>}, {transform_indices = @transform_1, window_bounds = array<i64: 16, 128>}, {transform_indices = @transform_2, window_bounds = array<i64: 16, 1>}, {pipeline_mode = #tpu.pipeline_mode<synchronous>, transform_indices = @transform_3, window_bounds = array<i64: 512, 128>}, {pipeline_mode = #tpu.pipeline_mode<synchronous>, transform_indices = @transform_4, window_bounds = array<i64: 12, 128>}, {transform_indices = @transform_5, window_bounds = array<i64: 16, 128>}, {transform_indices = @transform_6, window_bounds = array<i64: 16, 1>}]} {
    %c0 = arith.constant 0 : index
    %c0_0 = arith.constant 0 : index
    %0 = vector.load %arg1[%c0, %c0_0] : memref<16x128xbf16, #tpu.memory_space<vmem>>, vector<16x128xbf16>
    %c0_1 = arith.constant 0 : index
    %c0_2 = arith.constant 0 : index
    %1 = vector.load %arg2[%c0_1, %c0_2] : memref<16x128xbf16, #tpu.memory_space<vmem>>, vector<16x128xbf16>
    %c0_3 = arith.constant 0 : index
    %c0_4 = arith.constant 0 : index
    %2 = vector.load %arg3[%c0_3, %c0_4] : memref<16x1xf32, #tpu.memory_space<vmem>>, vector<16x1xf32>
    %c0_5 = arith.constant 0 : index
    %c0_6 = arith.constant 0 : index
    %3 = vector.load %arg5[%c0_5, %c0_6] : memref<12x128xf32, #tpu.memory_space<vmem>>, vector<12x128xf32>
    %c0_7 = arith.constant 0 : index
    %c0_8 = arith.constant 0 : index
    %4 = vector.load %arg4[%c0_7, %c0_8] : memref<512x128xbf16, #tpu.memory_space<vmem>>, vector<128x128xbf16>
    %cst = arith.constant dense<0.000000e+00> : vector<16x128xf32>
    %5 = tpu.matmul %0, %4, %cst {dimension_numbers = #tpu.dot_dimension_numbers<[1], [0], [0], [1], [0, 0, 1, 1], [], []>} : vector<16x128xbf16>, vector<128x128xbf16>, vector<16x128xf32> -> vector<16x128xf32>
    %c128 = arith.constant 128 : index
    %c0_9 = arith.constant 0 : index
    %6 = vector.load %arg4[%c128, %c0_9] : memref<512x128xbf16, #tpu.memory_space<vmem>>, vector<128x128xbf16>
    %cst_10 = arith.constant dense<0.000000e+00> : vector<16x128xf32>
    %7 = tpu.matmul %1, %6, %cst_10 {dimension_numbers = #tpu.dot_dimension_numbers<[1], [0], [0], [1], [0, 0, 1, 1], [], []>} : vector<16x128xbf16>, vector<128x128xbf16>, vector<16x128xf32> -> vector<16x128xf32>
    %8 = arith.addf %5, %7 : vector<16x128xf32>
    %9 = vector.extract_strided_slice %3 {offsets = [9, 0], sizes = [1, 128], strides = [1, 1]} : vector<12x128xf32> to vector<1x128xf32>
    %10 = vector.broadcast %2 : vector<16x1xf32> to vector<16x128xf32>
    %11 = vector.broadcast %9 : vector<1x128xf32> to vector<16x128xf32>
    %12 = arith.mulf %10, %11 : vector<16x128xf32>
    %13 = arith.addf %8, %12 : vector<16x128xf32>
    %14 = vector.extract_strided_slice %3 {offsets = [0, 0], sizes = [1, 128], strides = [1, 1]} : vector<12x128xf32> to vector<1x128xf32>
    %15 = vector.broadcast %14 : vector<1x128xf32> to vector<16x128xf32>
    %16 = arith.addf %13, %15 : vector<16x128xf32>
    %17 = vector.extract_strided_slice %3 {offsets = [1, 0], sizes = [1, 128], strides = [1, 1]} : vector<12x128xf32> to vector<1x128xf32>
    %18 = vector.extract_strided_slice %3 {offsets = [2, 0], sizes = [1, 128], strides = [1, 1]} : vector<12x128xf32> to vector<1x128xf32>
    %cst_11 = arith.constant dense<0.000000e+00> : vector<16xf32>
    %19 = vector.multi_reduction <add>, %16, %cst_11 [1] : vector<16x128xf32> to vector<16xf32>
    %20 = vector.shape_cast %19 : vector<16xf32> to vector<16x1xf32>
    %21 = arith.mulf %16, %16 : vector<16x128xf32>
    %cst_12 = arith.constant dense<0.000000e+00> : vector<16xf32>
    %22 = vector.multi_reduction <add>, %21, %cst_12 [1] : vector<16x128xf32> to vector<16xf32>
    %23 = vector.shape_cast %22 : vector<16xf32> to vector<16x1xf32>
    %cst_13 = arith.constant 7.812500e-03 : f32
    %24 = vector.broadcast %cst_13 : f32 to vector<16x1xf32>
    %25 = arith.mulf %20, %24 : vector<16x1xf32>
    %cst_14 = arith.constant 7.812500e-03 : f32
    %26 = vector.broadcast %cst_14 : f32 to vector<16x1xf32>
    %27 = arith.mulf %23, %26 : vector<16x1xf32>
    %28 = arith.mulf %25, %25 : vector<16x1xf32>
    %29 = arith.subf %27, %28 : vector<16x1xf32>
    %cst_15 = arith.constant 0.000000e+00 : f32
    %30 = vector.broadcast %cst_15 : f32 to vector<16x1xf32>
    %31 = arith.maximumf %29, %30 : vector<16x1xf32>
    %32 = vector.broadcast %25 : vector<16x1xf32> to vector<16x128xf32>
    %33 = arith.subf %16, %32 : vector<16x128xf32>
    %cst_16 = arith.constant 9.99999974E-6 : f32
    %34 = vector.broadcast %cst_16 : f32 to vector<16x1xf32>
    %35 = arith.addf %31, %34 : vector<16x1xf32>
    %36 = math.rsqrt %35 : vector<16x1xf32>
    %37 = vector.broadcast %36 : vector<16x1xf32> to vector<16x128xf32>
    %38 = arith.mulf %33, %37 : vector<16x128xf32>
    %39 = vector.broadcast %17 : vector<1x128xf32> to vector<16x128xf32>
    %40 = arith.mulf %38, %39 : vector<16x128xf32>
    %41 = vector.broadcast %18 : vector<1x128xf32> to vector<16x128xf32>
    %42 = arith.addf %40, %41 : vector<16x128xf32>
    %cst_17 = arith.constant 0.000000e+00 : f32
    %43 = vector.broadcast %cst_17 : f32 to vector<16x128xf32>
    %44 = arith.maximumf %42, %43 : vector<16x128xf32>
    %45 = arith.truncf %44 : vector<16x128xf32> to vector<16x128xbf16>
    %c256 = arith.constant 256 : index
    %c0_18 = arith.constant 0 : index
    %46 = vector.load %arg4[%c256, %c0_18] : memref<512x128xbf16, #tpu.memory_space<vmem>>, vector<128x128xbf16>
    %cst_19 = arith.constant dense<0.000000e+00> : vector<16x128xf32>
    %47 = tpu.matmul %45, %46, %cst_19 {dimension_numbers = #tpu.dot_dimension_numbers<[1], [0], [0], [1], [0, 0, 1, 1], [], []>} : vector<16x128xbf16>, vector<128x128xbf16>, vector<16x128xf32> -> vector<16x128xf32>
    %48 = vector.extract_strided_slice %3 {offsets = [3, 0], sizes = [1, 128], strides = [1, 1]} : vector<12x128xf32> to vector<1x128xf32>
    %49 = vector.broadcast %48 : vector<1x128xf32> to vector<16x128xf32>
    %50 = arith.addf %47, %49 : vector<16x128xf32>
    %51 = vector.extract_strided_slice %3 {offsets = [4, 0], sizes = [1, 128], strides = [1, 1]} : vector<12x128xf32> to vector<1x128xf32>
    %52 = vector.extract_strided_slice %3 {offsets = [5, 0], sizes = [1, 128], strides = [1, 1]} : vector<12x128xf32> to vector<1x128xf32>
    %cst_20 = arith.constant dense<0.000000e+00> : vector<16xf32>
    %53 = vector.multi_reduction <add>, %50, %cst_20 [1] : vector<16x128xf32> to vector<16xf32>
    %54 = vector.shape_cast %53 : vector<16xf32> to vector<16x1xf32>
    %55 = arith.mulf %50, %50 : vector<16x128xf32>
    %cst_21 = arith.constant dense<0.000000e+00> : vector<16xf32>
    %56 = vector.multi_reduction <add>, %55, %cst_21 [1] : vector<16x128xf32> to vector<16xf32>
    %57 = vector.shape_cast %56 : vector<16xf32> to vector<16x1xf32>
    %cst_22 = arith.constant 7.812500e-03 : f32
    %58 = vector.broadcast %cst_22 : f32 to vector<16x1xf32>
    %59 = arith.mulf %54, %58 : vector<16x1xf32>
    %cst_23 = arith.constant 7.812500e-03 : f32
    %60 = vector.broadcast %cst_23 : f32 to vector<16x1xf32>
    %61 = arith.mulf %57, %60 : vector<16x1xf32>
    %62 = arith.mulf %59, %59 : vector<16x1xf32>
    %63 = arith.subf %61, %62 : vector<16x1xf32>
    %cst_24 = arith.constant 0.000000e+00 : f32
    %64 = vector.broadcast %cst_24 : f32 to vector<16x1xf32>
    %65 = arith.maximumf %63, %64 : vector<16x1xf32>
    %66 = vector.broadcast %59 : vector<16x1xf32> to vector<16x128xf32>
    %67 = arith.subf %50, %66 : vector<16x128xf32>
    %cst_25 = arith.constant 9.99999974E-6 : f32
    %68 = vector.broadcast %cst_25 : f32 to vector<16x1xf32>
    %69 = arith.addf %65, %68 : vector<16x1xf32>
    %70 = math.rsqrt %69 : vector<16x1xf32>
    %71 = vector.broadcast %70 : vector<16x1xf32> to vector<16x128xf32>
    %72 = arith.mulf %67, %71 : vector<16x128xf32>
    %73 = vector.broadcast %51 : vector<1x128xf32> to vector<16x128xf32>
    %74 = arith.mulf %72, %73 : vector<16x128xf32>
    %75 = vector.broadcast %52 : vector<1x128xf32> to vector<16x128xf32>
    %76 = arith.addf %74, %75 : vector<16x128xf32>
    %cst_26 = arith.constant 0.000000e+00 : f32
    %77 = vector.broadcast %cst_26 : f32 to vector<16x128xf32>
    %78 = arith.maximumf %76, %77 : vector<16x128xf32>
    %79 = arith.truncf %78 : vector<16x128xf32> to vector<16x128xbf16>
    %c384 = arith.constant 384 : index
    %c0_27 = arith.constant 0 : index
    %80 = vector.load %arg4[%c384, %c0_27] : memref<512x128xbf16, #tpu.memory_space<vmem>>, vector<128x128xbf16>
    %cst_28 = arith.constant dense<0.000000e+00> : vector<16x128xf32>
    %81 = tpu.matmul %79, %80, %cst_28 {dimension_numbers = #tpu.dot_dimension_numbers<[1], [0], [0], [1], [0, 0, 1, 1], [], []>} : vector<16x128xbf16>, vector<128x128xbf16>, vector<16x128xf32> -> vector<16x128xf32>
    %82 = vector.extract_strided_slice %3 {offsets = [6, 0], sizes = [1, 128], strides = [1, 1]} : vector<12x128xf32> to vector<1x128xf32>
    %83 = vector.broadcast %82 : vector<1x128xf32> to vector<16x128xf32>
    %84 = arith.addf %81, %83 : vector<16x128xf32>
    %85 = vector.extract_strided_slice %3 {offsets = [7, 0], sizes = [1, 128], strides = [1, 1]} : vector<12x128xf32> to vector<1x128xf32>
    %86 = vector.extract_strided_slice %3 {offsets = [8, 0], sizes = [1, 128], strides = [1, 1]} : vector<12x128xf32> to vector<1x128xf32>
    %cst_29 = arith.constant dense<0.000000e+00> : vector<16xf32>
    %87 = vector.multi_reduction <add>, %84, %cst_29 [1] : vector<16x128xf32> to vector<16xf32>
    %88 = vector.shape_cast %87 : vector<16xf32> to vector<16x1xf32>
    %89 = arith.mulf %84, %84 : vector<16x128xf32>
    %cst_30 = arith.constant dense<0.000000e+00> : vector<16xf32>
    %90 = vector.multi_reduction <add>, %89, %cst_30 [1] : vector<16x128xf32> to vector<16xf32>
    %91 = vector.shape_cast %90 : vector<16xf32> to vector<16x1xf32>
    %cst_31 = arith.constant 7.812500e-03 : f32
    %92 = vector.broadcast %cst_31 : f32 to vector<16x1xf32>
    %93 = arith.mulf %88, %92 : vector<16x1xf32>
    %cst_32 = arith.constant 7.812500e-03 : f32
    %94 = vector.broadcast %cst_32 : f32 to vector<16x1xf32>
    %95 = arith.mulf %91, %94 : vector<16x1xf32>
    %96 = arith.mulf %93, %93 : vector<16x1xf32>
    %97 = arith.subf %95, %96 : vector<16x1xf32>
    %cst_33 = arith.constant 0.000000e+00 : f32
    %98 = vector.broadcast %cst_33 : f32 to vector<16x1xf32>
    %99 = arith.maximumf %97, %98 : vector<16x1xf32>
    %100 = vector.broadcast %93 : vector<16x1xf32> to vector<16x128xf32>
    %101 = arith.subf %84, %100 : vector<16x128xf32>
    %cst_34 = arith.constant 9.99999974E-6 : f32
    %102 = vector.broadcast %cst_34 : f32 to vector<16x1xf32>
    %103 = arith.addf %99, %102 : vector<16x1xf32>
    %104 = math.rsqrt %103 : vector<16x1xf32>
    %105 = vector.broadcast %104 : vector<16x1xf32> to vector<16x128xf32>
    %106 = arith.mulf %101, %105 : vector<16x128xf32>
    %107 = vector.broadcast %85 : vector<1x128xf32> to vector<16x128xf32>
    %108 = arith.mulf %106, %107 : vector<16x128xf32>
    %109 = vector.broadcast %86 : vector<1x128xf32> to vector<16x128xf32>
    %110 = arith.addf %108, %109 : vector<16x128xf32>
    %cst_35 = arith.constant 0.000000e+00 : f32
    %111 = vector.broadcast %cst_35 : f32 to vector<16x128xf32>
    %112 = arith.maximumf %110, %111 : vector<16x128xf32>
    %113 = vector.extract_strided_slice %3 {offsets = [10, 0], sizes = [1, 128], strides = [1, 1]} : vector<12x128xf32> to vector<1x128xf32>
    %114 = vector.broadcast %113 : vector<1x128xf32> to vector<16x128xf32>
    %115 = arith.mulf %112, %114 : vector<16x128xf32>
    %cst_36 = arith.constant dense<0.000000e+00> : vector<16xf32>
    %116 = vector.multi_reduction <add>, %115, %cst_36 [1] : vector<16x128xf32> to vector<16xf32>
    %117 = vector.shape_cast %116 : vector<16xf32> to vector<16x1xf32>
    %118 = vector.extract_strided_slice %3 {offsets = [11, 0], sizes = [1, 128], strides = [1, 1]} : vector<12x128xf32> to vector<1x128xf32>
    %119 = vector.extract_strided_slice %118 {offsets = [0, 0], sizes = [1, 1], strides = [1, 1]} : vector<1x128xf32> to vector<1x1xf32>
    %120 = vector.broadcast %119 : vector<1x1xf32> to vector<16x1xf32>
    %121 = arith.addf %117, %120 : vector<16x1xf32>
    %122 = arith.truncf %78 : vector<16x128xf32> to vector<16x128xbf16>
    %c0_37 = arith.constant 0 : index
    %c0_38 = arith.constant 0 : index
    %123 = vector.load %arg6[%c0_37, %c0_38] : memref<16x128xbf16, #tpu.memory_space<vmem>>, vector<16x128xbf16>
    tpu.vector_store %arg6[%c0_37, %c0_38], %122 {strides = array<i32>} : memref<16x128xbf16, #tpu.memory_space<vmem>>, vector<16x128xbf16>,
    %c0_39 = arith.constant 0 : index
    %c0_40 = arith.constant 0 : index
    %124 = vector.load %arg7[%c0_39, %c0_40] : memref<16x1xf32, #tpu.memory_space<vmem>>, vector<16x1xf32>
    tpu.vector_store %arg7[%c0_39, %c0_40], %121 {strides = array<i32>} : memref<16x1xf32, #tpu.memory_space<vmem>>, vector<16x1xf32>,
    return
  }
  func.func @transform_0(%arg0: i32) -> (i32, i32) {
    %c0_i32 = arith.constant 0 : i32
    %c0_i32_0 = arith.constant 0 : i32
    return %arg0, %c0_i32 : i32, i32
  }
  func.func @transform_1(%arg0: i32) -> (i32, i32) {
    %c0_i32 = arith.constant 0 : i32
    %c0_i32_0 = arith.constant 0 : i32
    return %arg0, %c0_i32 : i32, i32
  }
  func.func @transform_2(%arg0: i32) -> (i32, i32) {
    %c0_i32 = arith.constant 0 : i32
    %c0_i32_0 = arith.constant 0 : i32
    return %arg0, %c0_i32 : i32, i32
  }
  func.func @transform_3(%arg0: i32) -> (i32, i32) {
    %c0_i32 = arith.constant 0 : i32
    %c0_i32_0 = arith.constant 0 : i32
    %c0_i32_1 = arith.constant 0 : i32
    return %c0_i32, %c0_i32_0 : i32, i32
  }
  func.func @transform_4(%arg0: i32) -> (i32, i32) {
    %c0_i32 = arith.constant 0 : i32
    %c0_i32_0 = arith.constant 0 : i32
    %c0_i32_1 = arith.constant 0 : i32
    return %c0_i32, %c0_i32_0 : i32, i32
  }
  func.func @transform_5(%arg0: i32) -> (i32, i32) {
    %c0_i32 = arith.constant 0 : i32
    %c0_i32_0 = arith.constant 0 : i32
    return %arg0, %c0_i32 : i32, i32
  }
  func.func @transform_6(%arg0: i32) -> (i32, i32) {
    %c0_i32 = arith.constant 0 : i32
    %c0_i32_0 = arith.constant 0 : i32
    return %arg0, %c0_i32 : i32, i32
  }
}

</mosaic_0001>

<llo_original>
// kernel: egnn_full_forward.6
$region0: #{egnn_full_forward.6}
  #allocation0 [shape = 'u32[]', space=smem, size = 0x4, offset = 0x4, fixed_abs, tag = 'smem constant byte address 0x4 - core index']
  #allocation1 [shape = 'u32[144,128]{1,0:T(1,128)}', space=vmem, size = 0x12000, scoped, tag = 'internal scratch']
  %s0 = inlined_call_operand.vmem [shape: bf16[16,128], index: 0, kind: input, shape index: {}]
  %s1 = inlined_call_operand.vmem [shape: bf16[16,128], index: 1, kind: input, shape index: {}]
  %s2 = inlined_call_operand.vmem [shape: f32[16,1], index: 2, kind: input, shape index: {}]
  %s3 = inlined_call_operand.vmem [shape: bf16[512,128], index: 3, kind: input, shape index: {}]
  %s4 = inlined_call_operand.vmem [shape: f32[12,128], index: 4, kind: input, shape index: {}]
  %s5 = inlined_call_operand.vmem [shape: bf16[16,128], index: 5, kind: output, shape index: {0}]
  %s6 = inlined_call_operand.vmem [shape: f32[16,1], index: 6, kind: output, shape index: {1}]
  %7 = xla_tuple %s5, %s6
  %s8 = sld [smem:[#allocation0]]
  $region38: #{egnn_full_forward.6} parent=0
    _
  %s10 = ssub.s32 1, %s8
  %s11 = scalar_select 0, %s10, %s8
  // Predicated region
  $region2: #{egnn_full_forward.6} parent=0 // pred_check
    _
  $region3: #{egnn_full_forward.6} parent=0 // pred_check_branch
    %13 = sbr.rel (0) target = $region5
  $region4: #{egnn_full_forward.6} parent=0 // pred_region
    _
  $region5: #{egnn_full_forward.6} parent=0 // pred_fallthru
    _
  // Predicated region
  $region6: #{egnn_full_forward.6} parent=0 // pred_check
    _
  $region7: #{egnn_full_forward.6} parent=0 // pred_check_branch
    %15 = sbr.rel (0) target = $region9
  $region8: #{egnn_full_forward.6} parent=0 // pred_region
    _
  $region9: #{egnn_full_forward.6} parent=0 // pred_fallthru
    _
  // Predicated region
  $region10: #{egnn_full_forward.6} parent=0 // pred_check
    _
  $region11: #{egnn_full_forward.6} parent=0 // pred_check_branch
    %17 = sbr.rel (0) target = $region13
  $region12: #{egnn_full_forward.6} parent=0 // pred_region
    _
  $region13: #{egnn_full_forward.6} parent=0 // pred_fallthru
    _
  // Predicated region
  $region14: #{egnn_full_forward.6} parent=0 // pred_check
    _
  $region15: #{egnn_full_forward.6} parent=0 // pred_check_branch
    %19 = sbr.rel (0) target = $region17
  $region16: #{egnn_full_forward.6} parent=0 // pred_region
    _
  $region17: #{egnn_full_forward.6} parent=0 // pred_fallthru
    _
  // Predicated region
  $region18: #{egnn_full_forward.6} parent=0 // pred_check
    _
  $region19: #{egnn_full_forward.6} parent=0 // pred_check_branch
    %21 = sbr.rel (0) target = $region21
  $region20: #{egnn_full_forward.6} parent=0 // pred_region
    _
  $region21: #{egnn_full_forward.6} parent=0 // pred_fallthru
    _
  %v23 = vld [vmem:[%s0] sm:$0xf]
  %v24 = vld [vmem:[%s0 + $0x4] sm:$0xf]
  %v25 = vld [vmem:[%s1] sm:$0xf]
  %v26 = vld [vmem:[%s1 + $0x4] sm:$0xf]
  %v27 = vld [vmem:[%s2] sm:$0xff]
  %v28 = vld [vmem:[%s2 + $0x8] sm:$0xff]
  %v29 = vld [vmem:[%s4] sm:$0xff]
  %v30 = vld [vmem:[%s4 + $0x8] sm:$0xf]
  %v31 = vld [vmem:[%s3] sm:$0xf]
  %v32 = vld [vmem:[%s3 + $0x4] sm:$0xf]
  %v33 = vld [vmem:[%s3 + $0x8] sm:$0xf]
  %v34 = vld [vmem:[%s3 + $0xc] sm:$0xf]
  %v35 = vld [vmem:[%s3 + $0x10] sm:$0xf]
  %v36 = vld [vmem:[%s3 + $0x14] sm:$0xf]
  %v37 = vld [vmem:[%s3 + $0x18] sm:$0xf]
  %v38 = vld [vmem:[%s3 + $0x1c] sm:$0xf]
  %v39 = vld [vmem:[%s3 + $0x20] sm:$0xf]
  %v40 = vld [vmem:[%s3 + $0x24] sm:$0xf]
  %v41 = vld [vmem:[%s3 + $0x28] sm:$0xf]
  %v42 = vld [vmem:[%s3 + $0x2c] sm:$0xf]
  %v43 = vld [vmem:[%s3 + $0x30] sm:$0xf]
  %v44 = vld [vmem:[%s3 + $0x34] sm:$0xf]
  %v45 = vld [vmem:[%s3 + $0x38] sm:$0xf]
  %v46 = vld [vmem:[%s3 + $0x3c] sm:$0xf]
  %v47 = vld [vmem:[%s3 + $0x40] sm:$0xf]
  %v48 = vld [vmem:[%s3 + $0x44] sm:$0xf]
  %v49 = vld [vmem:[%s3 + $0x48] sm:$0xf]
  %v50 = vld [vmem:[%s3 + $0x4c] sm:$0xf]
  %v51 = vld [vmem:[%s3 + $0x50] sm:$0xf]
  %v52 = vld [vmem:[%s3 + $0x54] sm:$0xf]
  %v53 = vld [vmem:[%s3 + $0x58] sm:$0xf]
  %v54 = vld [vmem:[%s3 + $0x5c] sm:$0xf]
  %v55 = vld [vmem:[%s3 + $0x60] sm:$0xf]
  %v56 = vld [vmem:[%s3 + $0x64] sm:$0xf]
  %v57 = vld [vmem:[%s3 + $0x68] sm:$0xf]
  %v58 = vld [vmem:[%s3 + $0x6c] sm:$0xf]
  %v59 = vld [vmem:[%s3 + $0x70] sm:$0xf]
  %v60 = vld [vmem:[%s3 + $0x74] sm:$0xf]
  %v61 = vld [vmem:[%s3 + $0x78] sm:$0xf]
  %v62 = vld [vmem:[%s3 + $0x7c] sm:$0xf]
  %v65 = vunpack.c.l.b16 %v25
  %v66 = vunpack.c.l.b16 %v26
  %v67 = vpack.c.b16 %v66, %v65
  %v85 = vunpack.c.l.b16 %v47
  %v86 = vunpack.c.l.b16 %v48
  %v87 = vunpack.c.l.b16 %v49
  %v88 = vunpack.c.l.b16 %v50
  %v89 = vunpack.c.l.b16 %v51
  %v90 = vunpack.c.l.b16 %v52
  %v91 = vunpack.c.l.b16 %v53
  %v92 = vunpack.c.l.b16 %v54
  %v93 = vunpack.c.l.b16 %v55
  %v94 = vunpack.c.l.b16 %v56
  %v95 = vunpack.c.l.b16 %v57
  %v96 = vunpack.c.l.b16 %v58
  %v97 = vunpack.c.l.b16 %v59
  %v98 = vunpack.c.l.b16 %v60
  %v99 = vunpack.c.l.b16 %v61
  %v100 = vunpack.c.l.b16 %v62
  %v101 = vpack.c.b16 %v86, %v85
  %v102 = vpack.c.b16 %v88, %v87
  %v103 = vpack.c.b16 %v90, %v89
  %v104 = vpack.c.b16 %v92, %v91
  %v105 = vpack.c.b16 %v94, %v93
  %v106 = vpack.c.b16 %v96, %v95
  %v107 = vpack.c.b16 %v98, %v97
  %v108 = vpack.c.b16 %v100, %v99
  %117 = vmatprep.subr.bf16.mxu0 0
  %118 = vmatpush1.bf16.msra.mxu0 %v101
  %119 = vmatprep.subr.bf16.mxu0 0
  %120 = vmatpush1.bf16.msra.mxu0 %v102
  %121 = vmatprep.subr.bf16.mxu0 0
  %122 = vmatpush1.bf16.msra.mxu0 %v103
  %123 = vmatprep.subr.bf16.mxu0 0
  %124 = vmatpush1.bf16.msra.mxu0 %v104
  %125 = vmatprep.subr.bf16.mxu0 0
  %126 = vmatpush1.bf16.msra.mxu0 %v105
  %127 = vmatprep.subr.bf16.mxu0 0
  %128 = vmatpush1.bf16.msra.mxu0 %v106
  %129 = vmatprep.subr.bf16.mxu0 0
  %130 = vmatpush1.bf16.msra.mxu0 %v107
  %131 = vmatprep.subr.bf16.mxu0 0
  %132 = vmatpush1.bf16.msra.mxu0 %v108
  %133 = vmatprep.subr.bf16.mxu0 0
  %134 = vmatpush1.bf16.msra.mxu0 0
  %135 = vmatprep.subr.bf16.mxu0 0
  %136 = vmatpush1.bf16.msra.mxu0 0
  %137 = vmatprep.subr.bf16.mxu0 0
  %138 = vmatpush1.bf16.msra.mxu0 0
  %139 = vmatprep.subr.bf16.mxu0 0
  %140 = vmatpush1.bf16.msra.mxu0 0
  %141 = vmatprep.subr.bf16.mxu0 0
  %142 = vmatpush1.bf16.msra.mxu0 0
  %143 = vmatprep.subr.bf16.mxu0 0
  %144 = vmatpush1.bf16.msra.mxu0 0
  %145 = vmatprep.subr.bf16.mxu0 0
  %146 = vmatpush1.bf16.msra.mxu0 0
  %147 = vmatprep.subr.bf16.mxu0 0
  %148 = vmatpush1.bf16.msra.mxu0 0
  %149 = vmatprep.mubr.bf16.mxu0 0
  %150 = vmatmul.mubr.bf16.gmra.mrb[0].mxu0 %v67
  %v151 = vpop.f32.mrb[0].mxu0
  %v152 = vadd.f32 0.0, %v151
  %v153 = vpop.f32.mrb[0].mxu0
  %v154 = vpop.f32.mrb[0].mxu0
  %v155 = vadd.f32 0.0, %v154
  %v156 = vpop.f32.mrb[0].mxu0
  %157 = vdwg.mxu0
  %v160 = vunpack.c.l.b16 %v23
  %v161 = vunpack.c.l.b16 %v24
  %v162 = vpack.c.b16 %v161, %v160
  %v180 = vunpack.c.l.b16 %v31
  %v181 = vunpack.c.l.b16 %v32
  %v182 = vunpack.c.l.b16 %v33
  %v183 = vunpack.c.l.b16 %v34
  %v184 = vunpack.c.l.b16 %v35
  %v185 = vunpack.c.l.b16 %v36
  %v186 = vunpack.c.l.b16 %v37
  %v187 = vunpack.c.l.b16 %v38
  %v188 = vunpack.c.l.b16 %v39
  %v189 = vunpack.c.l.b16 %v40
  %v190 = vunpack.c.l.b16 %v41
  %v191 = vunpack.c.l.b16 %v42
  %v192 = vunpack.c.l.b16 %v43
  %v193 = vunpack.c.l.b16 %v44
  %v194 = vunpack.c.l.b16 %v45
  %v195 = vunpack.c.l.b16 %v46
  %v196 = vpack.c.b16 %v181, %v180
  %v197 = vpack.c.b16 %v183, %v182
  %v198 = vpack.c.b16 %v185, %v184
  %v199 = vpack.c.b16 %v187, %v186
  %v200 = vpack.c.b16 %v189, %v188
  %v201 = vpack.c.b16 %v191, %v190
  %v202 = vpack.c.b16 %v193, %v192
  %v203 = vpack.c.b16 %v195, %v194
  %212 = vmatprep.subr.bf16.mxu0 0
  %213 = vmatpush1.bf16.msra.mxu0 %v196
  %214 = vmatprep.subr.bf16.mxu0 0
  %215 = vmatpush1.bf16.msra.mxu0 %v197
  %216 = vmatprep.subr.bf16.mxu0 0
  %217 = vmatpush1.bf16.msra.mxu0 %v198
  %218 = vmatprep.subr.bf16.mxu0 0
  %219 = vmatpush1.bf16.msra.mxu0 %v199
  %220 = vmatprep.subr.bf16.mxu0 0
  %221 = vmatpush1.bf16.msra.mxu0 %v200
  %222 = vmatprep.subr.bf16.mxu0 0
  %223 = vmatpush1.bf16.msra.mxu0 %v201
  %224 = vmatprep.subr.bf16.mxu0 0
  %225 = vmatpush1.bf16.msra.mxu0 %v202
  %226 = vmatprep.subr.bf16.mxu0 0
  %227 = vmatpush1.bf16.msra.mxu0 %v203
  %228 = vmatprep.subr.bf16.mxu0 0
  %229 = vmatpush1.bf16.msra.mxu0 0
  %230 = vmatprep.subr.bf16.mxu0 0
  %231 = vmatpush1.bf16.msra.mxu0 0
  %232 = vmatprep.subr.bf16.mxu0 0
  %233 = vmatpush1.bf16.msra.mxu0 0
  %234 = vmatprep.subr.bf16.mxu0 0
  %235 = vmatpush1.bf16.msra.mxu0 0
  %236 = vmatprep.subr.bf16.mxu0 0
  %237 = vmatpush1.bf16.msra.mxu0 0
  %238 = vmatprep.subr.bf16.mxu0 0
  %239 = vmatpush1.bf16.msra.mxu0 0
  %240 = vmatprep.subr.bf16.mxu0 0
  %241 = vmatpush1.bf16.msra.mxu0 0
  %242 = vmatprep.subr.bf16.mxu0 0
  %243 = vmatpush1.bf16.msra.mxu0 0
  %244 = vmatprep.mubr.bf16.mxu0 0
  %245 = vmatmul.mubr.bf16.gmra.mrb[0].mxu0 %v162
  %v246 = vpop.f32.mrb[0].mxu0
  %v247 = vadd.f32 %v152, %v246
  %v248 = vpop.f32.mrb[0].mxu0
  %v249 = vpop.f32.mrb[0].mxu0
  %v250 = vadd.f32 %v155, %v249
  %v251 = vpop.f32.mrb[0].mxu0
  %252 = vdwg.mxu0
  %254 = vset.pattern.permute.xlu0 0
  %255 = vperm.xlu0 %254, %v27
  %v256 = vpop.permute.xlu0 %255
  %259 = vset.pattern.permute.xlu0 0
  %260 = vperm.xlu0 %259, %v28
  %v261 = vpop.permute.xlu0 %260
  %v263 = vlaneseq
  %v264 = vshrl.u32 %v263, 7
  %v265 = vsub.s32 1, %v264
  %v266 = vrot.slane %v30, %v265
  %v267 = vmul.f32 %v256, %v266
  %v268 = vmul.f32 %v261, %v266
  %v269 = vadd.f32 %v247, %v267
  %v270 = vadd.f32 %v250, %v268
  %v271 = vlaneseq
  %v272 = vshrl.u32 %v271, 7
  %v273 = vsub.s32 0, %v272
  %v274 = vrot.slane %v29, %v273
  %v275 = vadd.f32 %v269, %v274
  %v276 = vadd.f32 %v270, %v274
  %277 = vadd.xlane.f32.xlu0 %v275
  %v278 = vpop.xlane.xlu0 %277
  %279 = vadd.xlane.f32.xlu0 %v276
  %v280 = vpop.xlane.xlu0 %279
  %v281 = vmul.f32 %v275, %v275
  %v282 = vmul.f32 %v276, %v276
  %283 = vadd.xlane.f32.xlu0 %v281
  %v284 = vpop.xlane.xlu0 %283
  %285 = vadd.xlane.f32.xlu0 %v282
  %v286 = vpop.xlane.xlu0 %285
  %v287 = vmul.f32 %v278, 0.0078125
  %v288 = vmul.f32 %v280, 0.0078125
  %v289 = vmul.f32 %v284, 0.0078125
  %v290 = vmul.f32 %v286, 0.0078125
  %v291 = vmul.f32 %v287, %v287
  %v292 = vmul.f32 %v288, %v288
  %v293 = vsub.f32 %v289, %v291
  %v294 = vsub.f32 %v290, %v292
  %v295 = vmax.f32 %v293, 0.0
  %v296 = vmax.f32 %v294, 0.0
  %v297 = vsub.f32 %v275, %v287
  %v298 = vsub.f32 %v276, %v288
  %v299 = vadd.f32 %v295, 1e-05
  %v300 = vadd.f32 %v296, 1e-05
  %v301 = vrsqrt.pop %v299
  %v302 = vrsqrt.pop %v300
  %v303 = vmul.f32 %v297, %v301
  %v304 = vmul.f32 %v298, %v302
  %v305 = vlaneseq
  %v306 = vshrl.u32 %v305, 7
  %v307 = vsub.s32 1, %v306
  %v308 = vrot.slane %v29, %v307
  %v309 = vmul.f32 %v303, %v308
  %v310 = vmul.f32 %v304, %v308
  %v311 = vlaneseq
  %v312 = vshrl.u32 %v311, 7
  %v313 = vsub.s32 2, %v312
  %v314 = vrot.slane %v29, %v313
  %v315 = vadd.f32 %v309, %v314
  %v316 = vadd.f32 %v310, %v314
  %v317 = vmax.f32 %v315, 0.0
  %v318 = vmax.f32 %v316, 0.0
  %v319 = vpack.c.bf16 %v318, %v317
  %v320 = vld [vmem:[%s3 + $0x80] sm:$0xf]
  %v321 = vld [vmem:[%s3 + $0x84] sm:$0xf]
  %v322 = vld [vmem:[%s3 + $0x88] sm:$0xf]
  %v323 = vld [vmem:[%s3 + $0x8c] sm:$0xf]
  %v324 = vld [vmem:[%s3 + $0x90] sm:$0xf]
  %v325 = vld [vmem:[%s3 + $0x94] sm:$0xf]
  %v326 = vld [vmem:[%s3 + $0x98] sm:$0xf]
  %v327 = vld [vmem:[%s3 + $0x9c] sm:$0xf]
  %v328 = vld [vmem:[%s3 + $0xa0] sm:$0xf]
  %v329 = vld [vmem:[%s3 + $0xa4] sm:$0xf]
  %v330 = vld [vmem:[%s3 + $0xa8] sm:$0xf]
  %v331 = vld [vmem:[%s3 + $0xac] sm:$0xf]
  %v332 = vld [vmem:[%s3 + $0xb0] sm:$0xf]
  %v333 = vld [vmem:[%s3 + $0xb4] sm:$0xf]
  %v334 = vld [vmem:[%s3 + $0xb8] sm:$0xf]
  %v335 = vld [vmem:[%s3 + $0xbc] sm:$0xf]
  %v336 = vlaneseq
  %v337 = vshrl.u32 %v336, 7
  %v338 = vsub.s32 3, %v337
  %v339 = vrot.slane %v29, %v338
  %v356 = vunpack.c.l.b16 %v320
  %v357 = vunpack.c.l.b16 %v321
  %v358 = vunpack.c.l.b16 %v322
  %v359 = vunpack.c.l.b16 %v323
  %v360 = vunpack.c.l.b16 %v324
  %v361 = vunpack.c.l.b16 %v325
  %v362 = vunpack.c.l.b16 %v326
  %v363 = vunpack.c.l.b16 %v327
  %v364 = vunpack.c.l.b16 %v328
  %v365 = vunpack.c.l.b16 %v329
  %v366 = vunpack.c.l.b16 %v330
  %v367 = vunpack.c.l.b16 %v331
  %v368 = vunpack.c.l.b16 %v332
  %v369 = vunpack.c.l.b16 %v333
  %v370 = vunpack.c.l.b16 %v334
  %v371 = vunpack.c.l.b16 %v335
  %v372 = vpack.c.b16 %v357, %v356
  %v373 = vpack.c.b16 %v359, %v358
  %v374 = vpack.c.b16 %v361, %v360
  %v375 = vpack.c.b16 %v363, %v362
  %v376 = vpack.c.b16 %v365, %v364
  %v377 = vpack.c.b16 %v367, %v366
  %v378 = vpack.c.b16 %v369, %v368
  %v379 = vpack.c.b16 %v371, %v370
  %388 = vmatprep.subr.bf16.mxu0 0
  %389 = vmatpush1.bf16.msra.mxu0 %v372
  %390 = vmatprep.subr.bf16.mxu0 0
  %391 = vmatpush1.bf16.msra.mxu0 %v373
  %392 = vmatprep.subr.bf16.mxu0 0
  %393 = vmatpush1.bf16.msra.mxu0 %v374
  %394 = vmatprep.subr.bf16.mxu0 0
  %395 = vmatpush1.bf16.msra.mxu0 %v375
  %396 = vmatprep.subr.bf16.mxu0 0
  %397 = vmatpush1.bf16.msra.mxu0 %v376
  %398 = vmatprep.subr.bf16.mxu0 0
  %399 = vmatpush1.bf16.msra.mxu0 %v377
  %400 = vmatprep.subr.bf16.mxu0 0
  %401 = vmatpush1.bf16.msra.mxu0 %v378
  %402 = vmatprep.subr.bf16.mxu0 0
  %403 = vmatpush1.bf16.msra.mxu0 %v379
  %404 = vmatprep.subr.bf16.mxu0 0
  %405 = vmatpush1.bf16.msra.mxu0 0
  %406 = vmatprep.subr.bf16.mxu0 0
  %407 = vmatpush1.bf16.msra.mxu0 0
  %408 = vmatprep.subr.bf16.mxu0 0
  %409 = vmatpush1.bf16.msra.mxu0 0
  %410 = vmatprep.subr.bf16.mxu0 0
  %411 = vmatpush1.bf16.msra.mxu0 0
  %412 = vmatprep.subr.bf16.mxu0 0
  %413 = vmatpush1.bf16.msra.mxu0 0
  %414 = vmatprep.subr.bf16.mxu0 0
  %415 = vmatpush1.bf16.msra.mxu0 0
  %416 = vmatprep.subr.bf16.mxu0 0
  %417 = vmatpush1.bf16.msra.mxu0 0
  %418 = vmatprep.subr.bf16.mxu0 0
  %419 = vmatpush1.bf16.msra.mxu0 0
  %420 = vmatprep.mubr.bf16.mxu0 0
  %421 = vmatmul.mubr.bf16.gmra.mrb[0].mxu0 %v319
  %v422 = vpop.f32.mrb[0].mxu0
  %v423 = vadd.f32 %v339, %v422
  %v424 = vpop.f32.mrb[0].mxu0
  %v425 = vpop.f32.mrb[0].mxu0
  %v426 = vadd.f32 %v339, %v425
  %v427 = vpop.f32.mrb[0].mxu0
  %428 = vdwg.mxu0
  %429 = vadd.xlane.f32.xlu0 %v423
  %v430 = vpop.xlane.xlu0 %429
  %431 = vadd.xlane.f32.xlu0 %v426
  %v432 = vpop.xlane.xlu0 %431
  %v433 = vmul.f32 %v423, %v423
  %v434 = vmul.f32 %v426, %v426
  %435 = vadd.xlane.f32.xlu0 %v433
  %v436 = vpop.xlane.xlu0 %435
  %437 = vadd.xlane.f32.xlu0 %v434
  %v438 = vpop.xlane.xlu0 %437
  %v439 = vmul.f32 %v430, 0.0078125
  %v440 = vmul.f32 %v432, 0.0078125
  %v441 = vmul.f32 %v436, 0.0078125
  %v442 = vmul.f32 %v438, 0.0078125
  %v443 = vmul.f32 %v439, %v439
  %v444 = vmul.f32 %v440, %v440
  %v445 = vsub.f32 %v441, %v443
  %v446 = vsub.f32 %v442, %v444
  %v447 = vmax.f32 %v445, 0.0
  %v448 = vmax.f32 %v446, 0.0
  %v449 = vsub.f32 %v423, %v439
  %v450 = vsub.f32 %v426, %v440
  %v451 = vadd.f32 %v447, 1e-05
  %v452 = vadd.f32 %v448, 1e-05
  %v453 = vrsqrt.pop %v451
  %v454 = vrsqrt.pop %v452
  %v455 = vmul.f32 %v449, %v453
  %v456 = vmul.f32 %v450, %v454
  %v457 = vlaneseq
  %v458 = vshrl.u32 %v457, 7
  %v459 = vsub.s32 4, %v458
  %v460 = vrot.slane %v29, %v459
  %v461 = vmul.f32 %v455, %v460
  %v462 = vmul.f32 %v456, %v460
  %v463 = vlaneseq
  %v464 = vshrl.u32 %v463, 7
  %v465 = vsub.s32 5, %v464
  %v466 = vrot.slane %v29, %v465
  %v467 = vadd.f32 %v461, %v466
  %v468 = vadd.f32 %v462, %v466
  %v469 = vmax.f32 %v467, 0.0
  %v470 = vmax.f32 %v468, 0.0
  %v471 = vpack.c.bf16 %v470, %v469
  %v472 = vld [vmem:[%s3 + $0xc0] sm:$0xf]
  %v473 = vld [vmem:[%s3 + $0xc4] sm:$0xf]
  %v474 = vld [vmem:[%s3 + $0xc8] sm:$0xf]
  %v475 = vld [vmem:[%s3 + $0xcc] sm:$0xf]
  %v476 = vld [vmem:[%s3 + $0xd0] sm:$0xf]
  %v477 = vld [vmem:[%s3 + $0xd4] sm:$0xf]
  %v478 = vld [vmem:[%s3 + $0xd8] sm:$0xf]
  %v479 = vld [vmem:[%s3 + $0xdc] sm:$0xf]
  %v480 = vld [vmem:[%s3 + $0xe0] sm:$0xf]
  %v481 = vld [vmem:[%s3 + $0xe4] sm:$0xf]
  %v482 = vld [vmem:[%s3 + $0xe8] sm:$0xf]
  %v483 = vld [vmem:[%s3 + $0xec] sm:$0xf]
  %v484 = vld [vmem:[%s3 + $0xf0] sm:$0xf]
  %v485 = vld [vmem:[%s3 + $0xf4] sm:$0xf]
  %v486 = vld [vmem:[%s3 + $0xf8] sm:$0xf]
  %v487 = vld [vmem:[%s3 + $0xfc] sm:$0xf]
  %v488 = vlaneseq
  %v489 = vshrl.u32 %v488, 7
  %v490 = vsub.s32 6, %v489
  %v491 = vrot.slane %v29, %v490
  %v508 = vunpack.c.l.b16 %v472
  %v509 = vunpack.c.l.b16 %v473
  %v510 = vunpack.c.l.b16 %v474
  %v511 = vunpack.c.l.b16 %v475
  %v512 = vunpack.c.l.b16 %v476
  %v513 = vunpack.c.l.b16 %v477
  %v514 = vunpack.c.l.b16 %v478
  %v515 = vunpack.c.l.b16 %v479
  %v516 = vunpack.c.l.b16 %v480
  %v517 = vunpack.c.l.b16 %v481
  %v518 = vunpack.c.l.b16 %v482
  %v519 = vunpack.c.l.b16 %v483
  %v520 = vunpack.c.l.b16 %v484
  %v521 = vunpack.c.l.b16 %v485
  %v522 = vunpack.c.l.b16 %v486
  %v523 = vunpack.c.l.b16 %v487
  %v524 = vpack.c.b16 %v509, %v508
  %v525 = vpack.c.b16 %v511, %v510
  %v526 = vpack.c.b16 %v513, %v512
  %v527 = vpack.c.b16 %v515, %v514
  %v528 = vpack.c.b16 %v517, %v516
  %v529 = vpack.c.b16 %v519, %v518
  %v530 = vpack.c.b16 %v521, %v520
  %v531 = vpack.c.b16 %v523, %v522
  %540 = vmatprep.subr.bf16.mxu0 0
  %541 = vmatpush1.bf16.msra.mxu0 %v524
  %542 = vmatprep.subr.bf16.mxu0 0
  %543 = vmatpush1.bf16.msra.mxu0 %v525
  %544 = vmatprep.subr.bf16.mxu0 0
  %545 = vmatpush1.bf16.msra.mxu0 %v526
  %546 = vmatprep.subr.bf16.mxu0 0
  %547 = vmatpush1.bf16.msra.mxu0 %v527
  %548 = vmatprep.subr.bf16.mxu0 0
  %549 = vmatpush1.bf16.msra.mxu0 %v528
  %550 = vmatprep.subr.bf16.mxu0 0
  %551 = vmatpush1.bf16.msra.mxu0 %v529
  %552 = vmatprep.subr.bf16.mxu0 0
  %553 = vmatpush1.bf16.msra.mxu0 %v530
  %554 = vmatprep.subr.bf16.mxu0 0
  %555 = vmatpush1.bf16.msra.mxu0 %v531
  %556 = vmatprep.subr.bf16.mxu0 0
  %557 = vmatpush1.bf16.msra.mxu0 0
  %558 = vmatprep.subr.bf16.mxu0 0
  %559 = vmatpush1.bf16.msra.mxu0 0
  %560 = vmatprep.subr.bf16.mxu0 0
  %561 = vmatpush1.bf16.msra.mxu0 0
  %562 = vmatprep.subr.bf16.mxu0 0
  %563 = vmatpush1.bf16.msra.mxu0 0
  %564 = vmatprep.subr.bf16.mxu0 0
  %565 = vmatpush1.bf16.msra.mxu0 0
  %566 = vmatprep.subr.bf16.mxu0 0
  %567 = vmatpush1.bf16.msra.mxu0 0
  %568 = vmatprep.subr.bf16.mxu0 0
  %569 = vmatpush1.bf16.msra.mxu0 0
  %570 = vmatprep.subr.bf16.mxu0 0
  %571 = vmatpush1.bf16.msra.mxu0 0
  %572 = vmatprep.mubr.bf16.mxu0 0
  %573 = vmatmul.mubr.bf16.gmra.mrb[0].mxu0 %v471
  %v574 = vpop.f32.mrb[0].mxu0
  %v575 = vadd.f32 %v491, %v574
  %v576 = vpop.f32.mrb[0].mxu0
  %v577 = vpop.f32.mrb[0].mxu0
  %v578 = vadd.f32 %v491, %v577
  %v579 = vpop.f32.mrb[0].mxu0
  %580 = vdwg.mxu0
  %581 = vadd.xlane.f32.xlu0 %v575
  %v582 = vpop.xlane.xlu0 %581
  %583 = vadd.xlane.f32.xlu0 %v578
  %v584 = vpop.xlane.xlu0 %583
  %v585 = vmul.f32 %v575, %v575
  %v586 = vmul.f32 %v578, %v578
  %587 = vadd.xlane.f32.xlu0 %v585
  %v588 = vpop.xlane.xlu0 %587
  %589 = vadd.xlane.f32.xlu0 %v586
  %v590 = vpop.xlane.xlu0 %589
  %v591 = vmul.f32 %v582, 0.0078125
  %v592 = vmul.f32 %v584, 0.0078125
  %v593 = vmul.f32 %v588, 0.0078125
  %v594 = vmul.f32 %v590, 0.0078125
  %v595 = vmul.f32 %v591, %v591
  %v596 = vmul.f32 %v592, %v592
  %v597 = vsub.f32 %v593, %v595
  %v598 = vsub.f32 %v594, %v596
  %v599 = vmax.f32 %v597, 0.0
  %v600 = vmax.f32 %v598, 0.0
  %v601 = vsub.f32 %v575, %v591
  %v602 = vsub.f32 %v578, %v592
  %v603 = vadd.f32 %v599, 1e-05
  %v604 = vadd.f32 %v600, 1e-05
  %v605 = vrsqrt.pop %v603
  %v606 = vrsqrt.pop %v604
  %v607 = vmul.f32 %v601, %v605
  %v608 = vmul.f32 %v602, %v606
  %v609 = vlaneseq
  %v610 = vshrl.u32 %v609, 7
  %v611 = vsub.s32 7, %v610
  %v612 = vrot.slane %v29, %v611
  %v613 = vmul.f32 %v607, %v612
  %v614 = vmul.f32 %v608, %v612
  %v615 = vlaneseq
  %v616 = vshrl.u32 %v615, 7
  %v617 = vsub.s32 0, %v616
  %v618 = vrot.slane %v30, %v617
  %v619 = vadd.f32 %v613, %v618
  %v620 = vadd.f32 %v614, %v618
  %v621 = vmax.f32 %v619, 0.0
  %v622 = vmax.f32 %v620, 0.0
  %v623 = vlaneseq
  %v624 = vshrl.u32 %v623, 7
  %v625 = vsub.s32 2, %v624
  %v626 = vrot.slane %v30, %v625
  %v627 = vmul.f32 %v621, %v626
  %v628 = vmul.f32 %v622, %v626
  %629 = vadd.xlane.f32.xlu0 %v627
  %v630 = vpop.xlane.xlu0 %629
  %631 = vadd.xlane.f32.xlu0 %v628
  %v632 = vpop.xlane.xlu0 %631
  %v633 = vlaneseq
  %v634 = vshrl.u32 %v633, 7
  %v635 = vsub.s32 3, %v634
  %v636 = vrot.slane %v30, %v635
  %v637 = vadd.f32 %v630, %v636
  %v638 = vadd.f32 %v632, %v636
  %v640 = vunpack.c.l.b16 %v471
  %v641 = vunpack.c.h.b16 %v471
  %v642 = vpack.c.b16 %v640, %v640
  %v643 = vpack.c.b16 %v641, %v641
  %646 = vst [vmem:[%s5] sm:$0xf] %v642
  %647 = vst [vmem:[%s5 + $0x4] sm:$0xf] %v643
  %vm648 = vcmask 7168
  %649 = vst.msk [vmem:[%s6] sm:$0xff] %vm648, %v637
  %650 = vst.msk [vmem:[%s6 + $0x8] sm:$0xff] %vm648, %v638
  // Predicated region
  $region22: #{egnn_full_forward.6} parent=0 // pred_check
    _
  $region23: #{egnn_full_forward.6} parent=0 // pred_check_branch
    %652 = sbr.rel (0) target = $region25
  $region24: #{egnn_full_forward.6} parent=0 // pred_region
    _
  $region25: #{egnn_full_forward.6} parent=0 // pred_fallthru
    _
  // Predicated region
  $region26: #{egnn_full_forward.6} parent=0 // pred_check
    _
  $region27: #{egnn_full_forward.6} parent=0 // pred_check_branch
    %654 = sbr.rel (0) target = $region29
  $region28: #{egnn_full_forward.6} parent=0 // pred_region
    _
  $region29: #{egnn_full_forward.6} parent=0 // pred_fallthru
    _
  // Predicated region
  $region30: #{egnn_full_forward.6} parent=0 // pred_check
    _
  $region31: #{egnn_full_forward.6} parent=0 // pred_check_branch
    %656 = sbr.rel (0) target = $region33
  $region32: #{egnn_full_forward.6} parent=0 // pred_region
    _
  $region33: #{egnn_full_forward.6} parent=0 // pred_fallthru
    _
  // Predicated region
  $region34: #{egnn_full_forward.6} parent=0 // pred_check
    _
  $region35: #{egnn_full_forward.6} parent=0 // pred_check_branch
    %658 = sbr.rel (0) target = $region37
  $region36: #{egnn_full_forward.6} parent=0 // pred_region
    _
  $region37: #{egnn_full_forward.6} parent=0 // pred_fallthru
    _

// kernel: egnn_full_forward.7
$region0: #{egnn_full_forward.7}
  #allocation0 [shape = 'u32[]', space=smem, size = 0x4, offset = 0x4, fixed_abs, tag = 'smem constant byte address 0x4 - core index']
  #allocation1 [shape = 'u32[144,128]{1,0:T(1,128)}', space=vmem, size = 0x12000, scoped, tag = 'internal scratch']
  %s0 = inlined_call_operand.vmem [shape: f32[16,128], index: 0, kind: input, shape index: {}]
  %s1 = inlined_call_operand.vmem [shape: bf16[16,128], index: 1, kind: input, shape index: {}]
  %s2 = inlined_call_operand.vmem [shape: bf16[384,128], index: 2, kind: input, shape index: {}]
  %s3 = inlined_call_operand.vmem [shape: f32[6,128], index: 3, kind: input, shape index: {}]
  %s4 = inlined_call_operand.vmem [shape: f32[16,128], index: 4, kind: output, shape index: {}]
  %s5 = sld [smem:[#allocation0]]
  $region26: #{egnn_full_forward.7} parent=0
    _
  %s7 = ssub.s32 1, %s5
  %s8 = scalar_select 0, %s7, %s5
  // Predicated region
  $region2: #{egnn_full_forward.7} parent=0 // pred_check
    _
  $region3: #{egnn_full_forward.7} parent=0 // pred_check_branch
    %10 = sbr.rel (0) target = $region5
  $region4: #{egnn_full_forward.7} parent=0 // pred_region
    _
  $region5: #{egnn_full_forward.7} parent=0 // pred_fallthru
    _
  // Predicated region
  $region6: #{egnn_full_forward.7} parent=0 // pred_check
    _
  $region7: #{egnn_full_forward.7} parent=0 // pred_check_branch
    %12 = sbr.rel (0) target = $region9
  $region8: #{egnn_full_forward.7} parent=0 // pred_region
    _
  $region9: #{egnn_full_forward.7} parent=0 // pred_fallthru
    _
  // Predicated region
  $region10: #{egnn_full_forward.7} parent=0 // pred_check
    _
  $region11: #{egnn_full_forward.7} parent=0 // pred_check_branch
    %14 = sbr.rel (0) target = $region13
  $region12: #{egnn_full_forward.7} parent=0 // pred_region
    _
  $region13: #{egnn_full_forward.7} parent=0 // pred_fallthru
    _
  // Predicated region
  $region14: #{egnn_full_forward.7} parent=0 // pred_check
    _
  $region15: #{egnn_full_forward.7} parent=0 // pred_check_branch
    %16 = sbr.rel (0) target = $region17
  $region16: #{egnn_full_forward.7} parent=0 // pred_region
    _
  $region17: #{egnn_full_forward.7} parent=0 // pred_fallthru
    _
  %v18 = vld [vmem:[%s0] sm:$0xff]
  %v19 = vld [vmem:[%s0 + $0x8] sm:$0xff]
  %v20 = vld [vmem:[%s1] sm:$0xf]
  %v21 = vld [vmem:[%s1 + $0x4] sm:$0xf]
  %v22 = vld [vmem:[%s3] sm:$0x3f]
  %v23 = vpack.c.bf16 %v19, %v18
  %v24 = vld [vmem:[%s2] sm:$0xf]
  %v25 = vld [vmem:[%s2 + $0x4] sm:$0xf]
  %v26 = vld [vmem:[%s2 + $0x8] sm:$0xf]
  %v27 = vld [vmem:[%s2 + $0xc] sm:$0xf]
  %v28 = vld [vmem:[%s2 + $0x10] sm:$0xf]
  %v29 = vld [vmem:[%s2 + $0x14] sm:$0xf]
  %v30 = vld [vmem:[%s2 + $0x18] sm:$0xf]
  %v31 = vld [vmem:[%s2 + $0x1c] sm:$0xf]
  %v32 = vld [vmem:[%s2 + $0x20] sm:$0xf]
  %v33 = vld [vmem:[%s2 + $0x24] sm:$0xf]
  %v34 = vld [vmem:[%s2 + $0x28] sm:$0xf]
  %v35 = vld [vmem:[%s2 + $0x2c] sm:$0xf]
  %v36 = vld [vmem:[%s2 + $0x30] sm:$0xf]
  %v37 = vld [vmem:[%s2 + $0x34] sm:$0xf]
  %v38 = vld [vmem:[%s2 + $0x38] sm:$0xf]
  %v39 = vld [vmem:[%s2 + $0x3c] sm:$0xf]
  %v40 = vld [vmem:[%s2 + $0x40] sm:$0xf]
  %v41 = vld [vmem:[%s2 + $0x44] sm:$0xf]
  %v42 = vld [vmem:[%s2 + $0x48] sm:$0xf]
  %v43 = vld [vmem:[%s2 + $0x4c] sm:$0xf]
  %v44 = vld [vmem:[%s2 + $0x50] sm:$0xf]
  %v45 = vld [vmem:[%s2 + $0x54] sm:$0xf]
  %v46 = vld [vmem:[%s2 + $0x58] sm:$0xf]
  %v47 = vld [vmem:[%s2 + $0x5c] sm:$0xf]
  %v48 = vld [vmem:[%s2 + $0x60] sm:$0xf]
  %v49 = vld [vmem:[%s2 + $0x64] sm:$0xf]
  %v50 = vld [vmem:[%s2 + $0x68] sm:$0xf]
  %v51 = vld [vmem:[%s2 + $0x6c] sm:$0xf]
  %v52 = vld [vmem:[%s2 + $0x70] sm:$0xf]
  %v53 = vld [vmem:[%s2 + $0x74] sm:$0xf]
  %v54 = vld [vmem:[%s2 + $0x78] sm:$0xf]
  %v55 = vld [vmem:[%s2 + $0x7c] sm:$0xf]
  %v58 = vunpack.c.l.b16 %v20
  %v59 = vunpack.c.l.b16 %v21
  %v60 = vpack.c.b16 %v59, %v58
  %v78 = vunpack.c.l.b16 %v40
  %v79 = vunpack.c.l.b16 %v41
  %v80 = vunpack.c.l.b16 %v42
  %v81 = vunpack.c.l.b16 %v43
  %v82 = vunpack.c.l.b16 %v44
  %v83 = vunpack.c.l.b16 %v45
  %v84 = vunpack.c.l.b16 %v46
  %v85 = vunpack.c.l.b16 %v47
  %v86 = vunpack.c.l.b16 %v48
  %v87 = vunpack.c.l.b16 %v49
  %v88 = vunpack.c.l.b16 %v50
  %v89 = vunpack.c.l.b16 %v51
  %v90 = vunpack.c.l.b16 %v52
  %v91 = vunpack.c.l.b16 %v53
  %v92 = vunpack.c.l.b16 %v54
  %v93 = vunpack.c.l.b16 %v55
  %v94 = vpack.c.b16 %v79, %v78
  %v95 = vpack.c.b16 %v81, %v80
  %v96 = vpack.c.b16 %v83, %v82
  %v97 = vpack.c.b16 %v85, %v84
  %v98 = vpack.c.b16 %v87, %v86
  %v99 = vpack.c.b16 %v89, %v88
  %v100 = vpack.c.b16 %v91, %v90
  %v101 = vpack.c.b16 %v93, %v92
  %110 = vmatprep.subr.bf16.mxu0 0
  %111 = vmatpush1.bf16.msra.mxu0 %v94
  %112 = vmatprep.subr.bf16.mxu0 0
  %113 = vmatpush1.bf16.msra.mxu0 %v95
  %114 = vmatprep.subr.bf16.mxu0 0
  %115 = vmatpush1.bf16.msra.mxu0 %v96
  %116 = vmatprep.subr.bf16.mxu0 0
  %117 = vmatpush1.bf16.msra.mxu0 %v97
  %118 = vmatprep.subr.bf16.mxu0 0
  %119 = vmatpush1.bf16.msra.mxu0 %v98
  %120 = vmatprep.subr.bf16.mxu0 0
  %121 = vmatpush1.bf16.msra.mxu0 %v99
  %122 = vmatprep.subr.bf16.mxu0 0
  %123 = vmatpush1.bf16.msra.mxu0 %v100
  %124 = vmatprep.subr.bf16.mxu0 0
  %125 = vmatpush1.bf16.msra.mxu0 %v101
  %126 = vmatprep.subr.bf16.mxu0 0
  %127 = vmatpush1.bf16.msra.mxu0 0
  %128 = vmatprep.subr.bf16.mxu0 0
  %129 = vmatpush1.bf16.msra.mxu0 0
  %130 = vmatprep.subr.bf16.mxu0 0
  %131 = vmatpush1.bf16.msra.mxu0 0
  %132 = vmatprep.subr.bf16.mxu0 0
  %133 = vmatpush1.bf16.msra.mxu0 0
  %134 = vmatprep.subr.bf16.mxu0 0
  %135 = vmatpush1.bf16.msra.mxu0 0
  %136 = vmatprep.subr.bf16.mxu0 0
  %137 = vmatpush1.bf16.msra.mxu0 0
  %138 = vmatprep.subr.bf16.mxu0 0
  %139 = vmatpush1.bf16.msra.mxu0 0
  %140 = vmatprep.subr.bf16.mxu0 0
  %141 = vmatpush1.bf16.msra.mxu0 0
  %142 = vmatprep.mubr.bf16.mxu0 0
  %143 = vmatmul.mubr.bf16.gmra.mrb[0].mxu0 %v60
  %v144 = vpop.f32.mrb[0].mxu0
  %v145 = vadd.f32 0.0, %v144
  %v146 = vpop.f32.mrb[0].mxu0
  %v147 = vpop.f32.mrb[0].mxu0
  %v148 = vadd.f32 0.0, %v147
  %v149 = vpop.f32.mrb[0].mxu0
  %150 = vdwg.mxu0
  %v167 = vunpack.c.l.b16 %v24
  %v168 = vunpack.c.l.b16 %v25
  %v169 = vunpack.c.l.b16 %v26
  %v170 = vunpack.c.l.b16 %v27
  %v171 = vunpack.c.l.b16 %v28
  %v172 = vunpack.c.l.b16 %v29
  %v173 = vunpack.c.l.b16 %v30
  %v174 = vunpack.c.l.b16 %v31
  %v175 = vunpack.c.l.b16 %v32
  %v176 = vunpack.c.l.b16 %v33
  %v177 = vunpack.c.l.b16 %v34
  %v178 = vunpack.c.l.b16 %v35
  %v179 = vunpack.c.l.b16 %v36
  %v180 = vunpack.c.l.b16 %v37
  %v181 = vunpack.c.l.b16 %v38
  %v182 = vunpack.c.l.b16 %v39
  %v183 = vpack.c.b16 %v168, %v167
  %v184 = vpack.c.b16 %v170, %v169
  %v185 = vpack.c.b16 %v172, %v171
  %v186 = vpack.c.b16 %v174, %v173
  %v187 = vpack.c.b16 %v176, %v175
  %v188 = vpack.c.b16 %v178, %v177
  %v189 = vpack.c.b16 %v180, %v179
  %v190 = vpack.c.b16 %v182, %v181
  %199 = vmatprep.subr.bf16.mxu0 0
  %200 = vmatpush1.bf16.msra.mxu0 %v183
  %201 = vmatprep.subr.bf16.mxu0 0
  %202 = vmatpush1.bf16.msra.mxu0 %v184
  %203 = vmatprep.subr.bf16.mxu0 0
  %204 = vmatpush1.bf16.msra.mxu0 %v185
  %205 = vmatprep.subr.bf16.mxu0 0
  %206 = vmatpush1.bf16.msra.mxu0 %v186
  %207 = vmatprep.subr.bf16.mxu0 0
  %208 = vmatpush1.bf16.msra.mxu0 %v187
  %209 = vmatprep.subr.bf16.mxu0 0
  %210 = vmatpush1.bf16.msra.mxu0 %v188
  %211 = vmatprep.subr.bf16.mxu0 0
  %212 = vmatpush1.bf16.msra.mxu0 %v189
  %213 = vmatprep.subr.bf16.mxu0 0
  %214 = vmatpush1.bf16.msra.mxu0 %v190
  %215 = vmatprep.subr.bf16.mxu0 0
  %216 = vmatpush1.bf16.msra.mxu0 0
  %217 = vmatprep.subr.bf16.mxu0 0
  %218 = vmatpush1.bf16.msra.mxu0 0
  %219 = vmatprep.subr.bf16.mxu0 0
  %220 = vmatpush1.bf16.msra.mxu0 0
  %221 = vmatprep.subr.bf16.mxu0 0
  %222 = vmatpush1.bf16.msra.mxu0 0
  %223 = vmatprep.subr.bf16.mxu0 0
  %224 = vmatpush1.bf16.msra.mxu0 0
  %225 = vmatprep.subr.bf16.mxu0 0
  %226 = vmatpush1.bf16.msra.mxu0 0
  %227 = vmatprep.subr.bf16.mxu0 0
  %228 = vmatpush1.bf16.msra.mxu0 0
  %229 = vmatprep.subr.bf16.mxu0 0
  %230 = vmatpush1.bf16.msra.mxu0 0
  %231 = vmatprep.mubr.bf16.mxu0 0
  %232 = vmatmul.mubr.bf16.gmra.mrb[0].mxu0 %v23
  %v233 = vpop.f32.mrb[0].mxu0
  %v234 = vadd.f32 %v145, %v233
  %v235 = vpop.f32.mrb[0].mxu0
  %v236 = vpop.f32.mrb[0].mxu0
  %v237 = vadd.f32 %v148, %v236
  %v238 = vpop.f32.mrb[0].mxu0
  %239 = vdwg.mxu0
  %v240 = vlaneseq
  %v241 = vshrl.u32 %v240, 7
  %v242 = vsub.s32 0, %v241
  %v243 = vrot.slane %v22, %v242
  %v244 = vadd.f32 %v234, %v243
  %v245 = vadd.f32 %v237, %v243
  %246 = vadd.xlane.f32.xlu0 %v244
  %v247 = vpop.xlane.xlu0 %246
  %248 = vadd.xlane.f32.xlu0 %v245
  %v249 = vpop.xlane.xlu0 %248
  %v250 = vmul.f32 %v244, %v244
  %v251 = vmul.f32 %v245, %v245
  %252 = vadd.xlane.f32.xlu0 %v250
  %v253 = vpop.xlane.xlu0 %252
  %254 = vadd.xlane.f32.xlu0 %v251
  %v255 = vpop.xlane.xlu0 %254
  %v256 = vmul.f32 %v247, 0.0078125
  %v257 = vmul.f32 %v249, 0.0078125
  %v258 = vmul.f32 %v253, 0.0078125
  %v259 = vmul.f32 %v255, 0.0078125
  %v260 = vmul.f32 %v256, %v256
  %v261 = vmul.f32 %v257, %v257
  %v262 = vsub.f32 %v258, %v260
  %v263 = vsub.f32 %v259, %v261
  %v264 = vmax.f32 %v262, 0.0
  %v265 = vmax.f32 %v263, 0.0
  %v266 = vsub.f32 %v244, %v256
  %v267 = vsub.f32 %v245, %v257
  %v268 = vadd.f32 %v264, 1e-05
  %v269 = vadd.f32 %v265, 1e-05
  %v270 = vrsqrt.pop %v268
  %v271 = vrsqrt.pop %v269
  %v272 = vmul.f32 %v266, %v270
  %v273 = vmul.f32 %v267, %v271
  %v274 = vlaneseq
  %v275 = vshrl.u32 %v274, 7
  %v276 = vsub.s32 1, %v275
  %v277 = vrot.slane %v22, %v276
  %v278 = vmul.f32 %v272, %v277
  %v279 = vmul.f32 %v273, %v277
  %v280 = vlaneseq
  %v281 = vshrl.u32 %v280, 7
  %v282 = vsub.s32 2, %v281
  %v283 = vrot.slane %v22, %v282
  %v284 = vadd.f32 %v278, %v283
  %v285 = vadd.f32 %v279, %v283
  %v286 = vmax.f32 %v284, 0.0
  %v287 = vmax.f32 %v285, 0.0
  %v288 = vpack.c.bf16 %v287, %v286
  %v289 = vld [vmem:[%s2 + $0x80] sm:$0xf]
  %v290 = vld [vmem:[%s2 + $0x84] sm:$0xf]
  %v291 = vld [vmem:[%s2 + $0x88] sm:$0xf]
  %v292 = vld [vmem:[%s2 + $0x8c] sm:$0xf]
  %v293 = vld [vmem:[%s2 + $0x90] sm:$0xf]
  %v294 = vld [vmem:[%s2 + $0x94] sm:$0xf]
  %v295 = vld [vmem:[%s2 + $0x98] sm:$0xf]
  %v296 = vld [vmem:[%s2 + $0x9c] sm:$0xf]
  %v297 = vld [vmem:[%s2 + $0xa0] sm:$0xf]
  %v298 = vld [vmem:[%s2 + $0xa4] sm:$0xf]
  %v299 = vld [vmem:[%s2 + $0xa8] sm:$0xf]
  %v300 = vld [vmem:[%s2 + $0xac] sm:$0xf]
  %v301 = vld [vmem:[%s2 + $0xb0] sm:$0xf]
  %v302 = vld [vmem:[%s2 + $0xb4] sm:$0xf]
  %v303 = vld [vmem:[%s2 + $0xb8] sm:$0xf]
  %v304 = vld [vmem:[%s2 + $0xbc] sm:$0xf]
  %v305 = vlaneseq
  %v306 = vshrl.u32 %v305, 7
  %v307 = vsub.s32 3, %v306
  %v308 = vrot.slane %v22, %v307
  %v325 = vunpack.c.l.b16 %v289
  %v326 = vunpack.c.l.b16 %v290
  %v327 = vunpack.c.l.b16 %v291
  %v328 = vunpack.c.l.b16 %v292
  %v329 = vunpack.c.l.b16 %v293
  %v330 = vunpack.c.l.b16 %v294
  %v331 = vunpack.c.l.b16 %v295
  %v332 = vunpack.c.l.b16 %v296
  %v333 = vunpack.c.l.b16 %v297
  %v334 = vunpack.c.l.b16 %v298
  %v335 = vunpack.c.l.b16 %v299
  %v336 = vunpack.c.l.b16 %v300
  %v337 = vunpack.c.l.b16 %v301
  %v338 = vunpack.c.l.b16 %v302
  %v339 = vunpack.c.l.b16 %v303
  %v340 = vunpack.c.l.b16 %v304
  %v341 = vpack.c.b16 %v326, %v325
  %v342 = vpack.c.b16 %v328, %v327
  %v343 = vpack.c.b16 %v330, %v329
  %v344 = vpack.c.b16 %v332, %v331
  %v345 = vpack.c.b16 %v334, %v333
  %v346 = vpack.c.b16 %v336, %v335
  %v347 = vpack.c.b16 %v338, %v337
  %v348 = vpack.c.b16 %v340, %v339
  %357 = vmatprep.subr.bf16.mxu0 0
  %358 = vmatpush1.bf16.msra.mxu0 %v341
  %359 = vmatprep.subr.bf16.mxu0 0
  %360 = vmatpush1.bf16.msra.mxu0 %v342
  %361 = vmatprep.subr.bf16.mxu0 0
  %362 = vmatpush1.bf16.msra.mxu0 %v343
  %363 = vmatprep.subr.bf16.mxu0 0
  %364 = vmatpush1.bf16.msra.mxu0 %v344
  %365 = vmatprep.subr.bf16.mxu0 0
  %366 = vmatpush1.bf16.msra.mxu0 %v345
  %367 = vmatprep.subr.bf16.mxu0 0
  %368 = vmatpush1.bf16.msra.mxu0 %v346
  %369 = vmatprep.subr.bf16.mxu0 0
  %370 = vmatpush1.bf16.msra.mxu0 %v347
  %371 = vmatprep.subr.bf16.mxu0 0
  %372 = vmatpush1.bf16.msra.mxu0 %v348
  %373 = vmatprep.subr.bf16.mxu0 0
  %374 = vmatpush1.bf16.msra.mxu0 0
  %375 = vmatprep.subr.bf16.mxu0 0
  %376 = vmatpush1.bf16.msra.mxu0 0
  %377 = vmatprep.subr.bf16.mxu0 0
  %378 = vmatpush1.bf16.msra.mxu0 0
  %379 = vmatprep.subr.bf16.mxu0 0
  %380 = vmatpush1.bf16.msra.mxu0 0
  %381 = vmatprep.subr.bf16.mxu0 0
  %382 = vmatpush1.bf16.msra.mxu0 0
  %383 = vmatprep.subr.bf16.mxu0 0
  %384 = vmatpush1.bf16.msra.mxu0 0
  %385 = vmatprep.subr.bf16.mxu0 0
  %386 = vmatpush1.bf16.msra.mxu0 0
  %387 = vmatprep.subr.bf16.mxu0 0
  %388 = vmatpush1.bf16.msra.mxu0 0
  %389 = vmatprep.mubr.bf16.mxu0 0
  %390 = vmatmul.mubr.bf16.gmra.mrb[0].mxu0 %v288
  %v391 = vpop.f32.mrb[0].mxu0
  %v392 = vadd.f32 %v308, %v391
  %v393 = vpop.f32.mrb[0].mxu0
  %v394 = vpop.f32.mrb[0].mxu0
  %v395 = vadd.f32 %v308, %v394
  %v396 = vpop.f32.mrb[0].mxu0
  %397 = vdwg.mxu0
  %398 = vadd.xlane.f32.xlu0 %v392
  %v399 = vpop.xlane.xlu0 %398
  %400 = vadd.xlane.f32.xlu0 %v395
  %v401 = vpop.xlane.xlu0 %400
  %v402 = vmul.f32 %v392, %v392
  %v403 = vmul.f32 %v395, %v395
  %404 = vadd.xlane.f32.xlu0 %v402
  %v405 = vpop.xlane.xlu0 %404
  %406 = vadd.xlane.f32.xlu0 %v403
  %v407 = vpop.xlane.xlu0 %406
  %v408 = vmul.f32 %v399, 0.0078125
  %v409 = vmul.f32 %v401, 0.0078125
  %v410 = vmul.f32 %v405, 0.0078125
  %v411 = vmul.f32 %v407, 0.0078125
  %v412 = vmul.f32 %v408, %v408
  %v413 = vmul.f32 %v409, %v409
  %v414 = vsub.f32 %v410, %v412
  %v415 = vsub.f32 %v411, %v413
  %v416 = vmax.f32 %v414, 0.0
  %v417 = vmax.f32 %v415, 0.0
  %v418 = vsub.f32 %v392, %v408
  %v419 = vsub.f32 %v395, %v409
  %v420 = vadd.f32 %v416, 1e-05
  %v421 = vadd.f32 %v417, 1e-05
  %v422 = vrsqrt.pop %v420
  %v423 = vrsqrt.pop %v421
  %v424 = vmul.f32 %v418, %v422
  %v425 = vmul.f32 %v419, %v423
  %v426 = vlaneseq
  %v427 = vshrl.u32 %v426, 7
  %v428 = vsub.s32 4, %v427
  %v429 = vrot.slane %v22, %v428
  %v430 = vmul.f32 %v424, %v429
  %v431 = vmul.f32 %v425, %v429
  %v432 = vlaneseq
  %v433 = vshrl.u32 %v432, 7
  %v434 = vsub.s32 5, %v433
  %v435 = vrot.slane %v22, %v434
  %v436 = vadd.f32 %v430, %v435
  %v437 = vadd.f32 %v431, %v435
  %v438 = vmax.f32 %v436, 0.0
  %v439 = vmax.f32 %v437, 0.0
  %v440 = vadd.f32 %v18, %v438
  %v441 = vadd.f32 %v19, %v439
  %442 = vst [vmem:[%s4] sm:$0xff] %v440
  %443 = vst [vmem:[%s4 + $0x8] sm:$0xff] %v441
  // Predicated region
  $region18: #{egnn_full_forward.7} parent=0 // pred_check
    _
  $region19: #{egnn_full_forward.7} parent=0 // pred_check_branch
    %445 = sbr.rel (0) target = $region21
  $region20: #{egnn_full_forward.7} parent=0 // pred_region
    _
  $region21: #{egnn_full_forward.7} parent=0 // pred_fallthru
    _
  // Predicated region
  $region22: #{egnn_full_forward.7} parent=0 // pred_check
    _
  $region23: #{egnn_full_forward.7} parent=0 // pred_check_branch
    %447 = sbr.rel (0) target = $region25
  $region24: #{egnn_full_forward.7} parent=0 // pred_region
    _
  $region25: #{egnn_full_forward.7} parent=0 // pred_fallthru
    _

// kernel: egnn_full_forward.10
$region0: #{egnn_full_forward.10}
  #allocation0 [shape = 'u32[]', space=smem, size = 0x4, offset = 0x4, fixed_abs, tag = 'smem constant byte address 0x4 - core index']
  #allocation1 [shape = 'u32[144,128]{1,0:T(1,128)}', space=vmem, size = 0x12000, scoped, tag = 'internal scratch']
  %s0 = inlined_call_operand.vmem [shape: bf16[16,128], index: 0, kind: input, shape index: {}]
  %s1 = inlined_call_operand.vmem [shape: bf16[16,128], index: 1, kind: input, shape index: {}]
  %s2 = inlined_call_operand.vmem [shape: f32[16,1], index: 2, kind: input, shape index: {}]
  %s3 = inlined_call_operand.vmem [shape: bf16[512,128], index: 3, kind: input, shape index: {}]
  %s4 = inlined_call_operand.vmem [shape: f32[12,128], index: 4, kind: input, shape index: {}]
  %s5 = inlined_call_operand.vmem [shape: bf16[16,128], index: 5, kind: output, shape index: {0}]
  %s6 = inlined_call_operand.hbm [shape: f32[16,1], index: 6, kind: output, shape index: {1}]
  %7 = xla_tuple %s5, %s6
  %s8 = sld [smem:[#allocation0]]
  $region38: #{egnn_full_forward.10} parent=0
    _
  %s10 = ssub.s32 1, %s8
  %s11 = scalar_select 0, %s10, %s8
  $region1: #{egnn_full_forward.10} parent=0
    #allocation2 [shape = 'u8[8192]{0}', space=vmem, size = 0x2000, scoped, tag = 'output window, operand 1, single buffered']
    #allocation3 [shape = 's32[1]{0}', space=sflag, size = 0x4, scoped, tag = 'scoped memory for egnn_full_forward.10']
    %12 = vsyncpa [#allocation3], 0
    // Predicated region
    $region2: #{egnn_full_forward.10} parent=1 // pred_check
      _
    $region3: #{egnn_full_forward.10} parent=1 // pred_check_branch
      %14 = sbr.rel (0) target = $region5
    $region4: #{egnn_full_forward.10} parent=1 // pred_region
      _
    $region5: #{egnn_full_forward.10} parent=1 // pred_fallthru
      _
    // Predicated region
    $region6: #{egnn_full_forward.10} parent=1 // pred_check
      _
    $region7: #{egnn_full_forward.10} parent=1 // pred_check_branch
      %16 = sbr.rel (0) target = $region9
    $region8: #{egnn_full_forward.10} parent=1 // pred_region
      _
    $region9: #{egnn_full_forward.10} parent=1 // pred_fallthru
      _
    // Predicated region
    $region10: #{egnn_full_forward.10} parent=1 // pred_check
      _
    $region11: #{egnn_full_forward.10} parent=1 // pred_check_branch
      %18 = sbr.rel (0) target = $region13
    $region12: #{egnn_full_forward.10} parent=1 // pred_region
      _
    $region13: #{egnn_full_forward.10} parent=1 // pred_fallthru
      _
    // Predicated region
    $region14: #{egnn_full_forward.10} parent=1 // pred_check
      _
    $region15: #{egnn_full_forward.10} parent=1 // pred_check_branch
      %20 = sbr.rel (0) target = $region17
    $region16: #{egnn_full_forward.10} parent=1 // pred_region
      _
    $region17: #{egnn_full_forward.10} parent=1 // pred_fallthru
      _
    // Predicated region
    $region18: #{egnn_full_forward.10} parent=1 // pred_check
      _
    $region19: #{egnn_full_forward.10} parent=1 // pred_check_branch
      %22 = sbr.rel (0) target = $region21
    $region20: #{egnn_full_forward.10} parent=1 // pred_region
      _
    $region21: #{egnn_full_forward.10} parent=1 // pred_fallthru
      _
    %v24 = vld [vmem:[%s0] sm:$0xf]
    %v25 = vld [vmem:[%s0 + $0x4] sm:$0xf]
    %v26 = vld [vmem:[%s1] sm:$0xf]
    %v27 = vld [vmem:[%s1 + $0x4] sm:$0xf]
    %v28 = vld [vmem:[%s2] sm:$0xff]
    %v29 = vld [vmem:[%s2 + $0x8] sm:$0xff]
    %v30 = vld [vmem:[%s4] sm:$0xff]
    %v31 = vld [vmem:[%s4 + $0x8] sm:$0xf]
    %v32 = vld [vmem:[%s3] sm:$0xf]
    %v33 = vld [vmem:[%s3 + $0x4] sm:$0xf]
    %v34 = vld [vmem:[%s3 + $0x8] sm:$0xf]
    %v35 = vld [vmem:[%s3 + $0xc] sm:$0xf]
    %v36 = vld [vmem:[%s3 + $0x10] sm:$0xf]
    %v37 = vld [vmem:[%s3 + $0x14] sm:$0xf]
    %v38 = vld [vmem:[%s3 + $0x18] sm:$0xf]
    %v39 = vld [vmem:[%s3 + $0x1c] sm:$0xf]
    %v40 = vld [vmem:[%s3 + $0x20] sm:$0xf]
    %v41 = vld [vmem:[%s3 + $0x24] sm:$0xf]
    %v42 = vld [vmem:[%s3 + $0x28] sm:$0xf]
    %v43 = vld [vmem:[%s3 + $0x2c] sm:$0xf]
    %v44 = vld [vmem:[%s3 + $0x30] sm:$0xf]
    %v45 = vld [vmem:[%s3 + $0x34] sm:$0xf]
    %v46 = vld [vmem:[%s3 + $0x38] sm:$0xf]
    %v47 = vld [vmem:[%s3 + $0x3c] sm:$0xf]
    %v48 = vld [vmem:[%s3 + $0x40] sm:$0xf]
    %v49 = vld [vmem:[%s3 + $0x44] sm:$0xf]
    %v50 = vld [vmem:[%s3 + $0x48] sm:$0xf]
    %v51 = vld [vmem:[%s3 + $0x4c] sm:$0xf]
    %v52 = vld [vmem:[%s3 + $0x50] sm:$0xf]
    %v53 = vld [vmem:[%s3 + $0x54] sm:$0xf]
    %v54 = vld [vmem:[%s3 + $0x58] sm:$0xf]
    %v55 = vld [vmem:[%s3 + $0x5c] sm:$0xf]
    %v56 = vld [vmem:[%s3 + $0x60] sm:$0xf]
    %v57 = vld [vmem:[%s3 + $0x64] sm:$0xf]
    %v58 = vld [vmem:[%s3 + $0x68] sm:$0xf]
    %v59 = vld [vmem:[%s3 + $0x6c] sm:$0xf]
    %v60 = vld [vmem:[%s3 + $0x70] sm:$0xf]
    %v61 = vld [vmem:[%s3 + $0x74] sm:$0xf]
    %v62 = vld [vmem:[%s3 + $0x78] sm:$0xf]
    %v63 = vld [vmem:[%s3 + $0x7c] sm:$0xf]
    %v66 = vunpack.c.l.b16 %v26
    %v67 = vunpack.c.l.b16 %v27
    %v68 = vpack.c.b16 %v67, %v66
    %v86 = vunpack.c.l.b16 %v48
    %v87 = vunpack.c.l.b16 %v49
    %v88 = vunpack.c.l.b16 %v50
    %v89 = vunpack.c.l.b16 %v51
    %v90 = vunpack.c.l.b16 %v52
    %v91 = vunpack.c.l.b16 %v53
    %v92 = vunpack.c.l.b16 %v54
    %v93 = vunpack.c.l.b16 %v55
    %v94 = vunpack.c.l.b16 %v56
    %v95 = vunpack.c.l.b16 %v57
    %v96 = vunpack.c.l.b16 %v58
    %v97 = vunpack.c.l.b16 %v59
    %v98 = vunpack.c.l.b16 %v60
    %v99 = vunpack.c.l.b16 %v61
    %v100 = vunpack.c.l.b16 %v62
    %v101 = vunpack.c.l.b16 %v63
    %v102 = vpack.c.b16 %v87, %v86
    %v103 = vpack.c.b16 %v89, %v88
    %v104 = vpack.c.b16 %v91, %v90
    %v105 = vpack.c.b16 %v93, %v92
    %v106 = vpack.c.b16 %v95, %v94
    %v107 = vpack.c.b16 %v97, %v96
    %v108 = vpack.c.b16 %v99, %v98
    %v109 = vpack.c.b16 %v101, %v100
    %118 = vmatprep.subr.bf16.mxu0 0
    %119 = vmatpush1.bf16.msra.mxu0 %v102
    %120 = vmatprep.subr.bf16.mxu0 0
    %121 = vmatpush1.bf16.msra.mxu0 %v103
    %122 = vmatprep.subr.bf16.mxu0 0
    %123 = vmatpush1.bf16.msra.mxu0 %v104
    %124 = vmatprep.subr.bf16.mxu0 0
    %125 = vmatpush1.bf16.msra.mxu0 %v105
    %126 = vmatprep.subr.bf16.mxu0 0
    %127 = vmatpush1.bf16.msra.mxu0 %v106
    %128 = vmatprep.subr.bf16.mxu0 0
    %129 = vmatpush1.bf16.msra.mxu0 %v107
    %130 = vmatprep.subr.bf16.mxu0 0
    %131 = vmatpush1.bf16.msra.mxu0 %v108
    %132 = vmatprep.subr.bf16.mxu0 0
    %133 = vmatpush1.bf16.msra.mxu0 %v109
    %134 = vmatprep.subr.bf16.mxu0 0
    %135 = vmatpush1.bf16.msra.mxu0 0
    %136 = vmatprep.subr.bf16.mxu0 0
    %137 = vmatpush1.bf16.msra.mxu0 0
    %138 = vmatprep.subr.bf16.mxu0 0
    %139 = vmatpush1.bf16.msra.mxu0 0
    %140 = vmatprep.subr.bf16.mxu0 0
    %141 = vmatpush1.bf16.msra.mxu0 0
    %142 = vmatprep.subr.bf16.mxu0 0
    %143 = vmatpush1.bf16.msra.mxu0 0
    %144 = vmatprep.subr.bf16.mxu0 0
    %145 = vmatpush1.bf16.msra.mxu0 0
    %146 = vmatprep.subr.bf16.mxu0 0
    %147 = vmatpush1.bf16.msra.mxu0 0
    %148 = vmatprep.subr.bf16.mxu0 0
    %149 = vmatpush1.bf16.msra.mxu0 0
    %150 = vmatprep.mubr.bf16.mxu0 0
    %151 = vmatmul.mubr.bf16.gmra.mrb[0].mxu0 %v68
    %v152 = vpop.f32.mrb[0].mxu0
    %v153 = vadd.f32 0.0, %v152
    %v154 = vpop.f32.mrb[0].mxu0
    %v155 = vpop.f32.mrb[0].mxu0
    %v156 = vadd.f32 0.0, %v155
    %v157 = vpop.f32.mrb[0].mxu0
    %158 = vdwg.mxu0
    %v161 = vunpack.c.l.b16 %v24
    %v162 = vunpack.c.l.b16 %v25
    %v163 = vpack.c.b16 %v162, %v161
    %v181 = vunpack.c.l.b16 %v32
    %v182 = vunpack.c.l.b16 %v33
    %v183 = vunpack.c.l.b16 %v34
    %v184 = vunpack.c.l.b16 %v35
    %v185 = vunpack.c.l.b16 %v36
    %v186 = vunpack.c.l.b16 %v37
    %v187 = vunpack.c.l.b16 %v38
    %v188 = vunpack.c.l.b16 %v39
    %v189 = vunpack.c.l.b16 %v40
    %v190 = vunpack.c.l.b16 %v41
    %v191 = vunpack.c.l.b16 %v42
    %v192 = vunpack.c.l.b16 %v43
    %v193 = vunpack.c.l.b16 %v44
    %v194 = vunpack.c.l.b16 %v45
    %v195 = vunpack.c.l.b16 %v46
    %v196 = vunpack.c.l.b16 %v47
    %v197 = vpack.c.b16 %v182, %v181
    %v198 = vpack.c.b16 %v184, %v183
    %v199 = vpack.c.b16 %v186, %v185
    %v200 = vpack.c.b16 %v188, %v187
    %v201 = vpack.c.b16 %v190, %v189
    %v202 = vpack.c.b16 %v192, %v191
    %v203 = vpack.c.b16 %v194, %v193
    %v204 = vpack.c.b16 %v196, %v195
    %213 = vmatprep.subr.bf16.mxu0 0
    %214 = vmatpush1.bf16.msra.mxu0 %v197
    %215 = vmatprep.subr.bf16.mxu0 0
    %216 = vmatpush1.bf16.msra.mxu0 %v198
    %217 = vmatprep.subr.bf16.mxu0 0
    %218 = vmatpush1.bf16.msra.mxu0 %v199
    %219 = vmatprep.subr.bf16.mxu0 0
    %220 = vmatpush1.bf16.msra.mxu0 %v200
    %221 = vmatprep.subr.bf16.mxu0 0
    %222 = vmatpush1.bf16.msra.mxu0 %v201
    %223 = vmatprep.subr.bf16.mxu0 0
    %224 = vmatpush1.bf16.msra.mxu0 %v202
    %225 = vmatprep.subr.bf16.mxu0 0
    %226 = vmatpush1.bf16.msra.mxu0 %v203
    %227 = vmatprep.subr.bf16.mxu0 0
    %228 = vmatpush1.bf16.msra.mxu0 %v204
    %229 = vmatprep.subr.bf16.mxu0 0
    %230 = vmatpush1.bf16.msra.mxu0 0
    %231 = vmatprep.subr.bf16.mxu0 0
    %232 = vmatpush1.bf16.msra.mxu0 0
    %233 = vmatprep.subr.bf16.mxu0 0
    %234 = vmatpush1.bf16.msra.mxu0 0
    %235 = vmatprep.subr.bf16.mxu0 0
    %236 = vmatpush1.bf16.msra.mxu0 0
    %237 = vmatprep.subr.bf16.mxu0 0
    %238 = vmatpush1.bf16.msra.mxu0 0
    %239 = vmatprep.subr.bf16.mxu0 0
    %240 = vmatpush1.bf16.msra.mxu0 0
    %241 = vmatprep.subr.bf16.mxu0 0
    %242 = vmatpush1.bf16.msra.mxu0 0
    %243 = vmatprep.subr.bf16.mxu0 0
    %244 = vmatpush1.bf16.msra.mxu0 0
    %245 = vmatprep.mubr.bf16.mxu0 0
    %246 = vmatmul.mubr.bf16.gmra.mrb[0].mxu0 %v163
    %v247 = vpop.f32.mrb[0].mxu0
    %v248 = vadd.f32 %v153, %v247
    %v249 = vpop.f32.mrb[0].mxu0
    %v250 = vpop.f32.mrb[0].mxu0
    %v251 = vadd.f32 %v156, %v250
    %v252 = vpop.f32.mrb[0].mxu0
    %253 = vdwg.mxu0
    %255 = vset.pattern.permute.xlu0 0
    %256 = vperm.xlu0 %255, %v28
    %v257 = vpop.permute.xlu0 %256
    %260 = vset.pattern.permute.xlu0 0
    %261 = vperm.xlu0 %260, %v29
    %v262 = vpop.permute.xlu0 %261
    %v264 = vlaneseq
    %v265 = vshrl.u32 %v264, 7
    %v266 = vsub.s32 1, %v265
    %v267 = vrot.slane %v31, %v266
    %v268 = vmul.f32 %v257, %v267
    %v269 = vmul.f32 %v262, %v267
    %v270 = vadd.f32 %v248, %v268
    %v271 = vadd.f32 %v251, %v269
    %v272 = vlaneseq
    %v273 = vshrl.u32 %v272, 7
    %v274 = vsub.s32 0, %v273
    %v275 = vrot.slane %v30, %v274
    %v276 = vadd.f32 %v270, %v275
    %v277 = vadd.f32 %v271, %v275
    %278 = vadd.xlane.f32.xlu0 %v276
    %v279 = vpop.xlane.xlu0 %278
    %280 = vadd.xlane.f32.xlu0 %v277
    %v281 = vpop.xlane.xlu0 %280
    %v282 = vmul.f32 %v276, %v276
    %v283 = vmul.f32 %v277, %v277
    %284 = vadd.xlane.f32.xlu0 %v282
    %v285 = vpop.xlane.xlu0 %284
    %286 = vadd.xlane.f32.xlu0 %v283
    %v287 = vpop.xlane.xlu0 %286
    %v288 = vmul.f32 %v279, 0.0078125
    %v289 = vmul.f32 %v281, 0.0078125
    %v290 = vmul.f32 %v285, 0.0078125
    %v291 = vmul.f32 %v287, 0.0078125
    %v292 = vmul.f32 %v288, %v288
    %v293 = vmul.f32 %v289, %v289
    %v294 = vsub.f32 %v290, %v292
    %v295 = vsub.f32 %v291, %v293
    %v296 = vmax.f32 %v294, 0.0
    %v297 = vmax.f32 %v295, 0.0
    %v298 = vsub.f32 %v276, %v288
    %v299 = vsub.f32 %v277, %v289
    %v300 = vadd.f32 %v296, 1e-05
    %v301 = vadd.f32 %v297, 1e-05
    %v302 = vrsqrt.pop %v300
    %v303 = vrsqrt.pop %v301
    %v304 = vmul.f32 %v298, %v302
    %v305 = vmul.f32 %v299, %v303
    %v306 = vlaneseq
    %v307 = vshrl.u32 %v306, 7
    %v308 = vsub.s32 1, %v307
    %v309 = vrot.slane %v30, %v308
    %v310 = vmul.f32 %v304, %v309
    %v311 = vmul.f32 %v305, %v309
    %v312 = vlaneseq
    %v313 = vshrl.u32 %v312, 7
    %v314 = vsub.s32 2, %v313
    %v315 = vrot.slane %v30, %v314
    %v316 = vadd.f32 %v310, %v315
    %v317 = vadd.f32 %v311, %v315
    %v318 = vmax.f32 %v316, 0.0
    %v319 = vmax.f32 %v317, 0.0
    %v320 = vpack.c.bf16 %v319, %v318
    %v321 = vld [vmem:[%s3 + $0x80] sm:$0xf]
    %v322 = vld [vmem:[%s3 + $0x84] sm:$0xf]
    %v323 = vld [vmem:[%s3 + $0x88] sm:$0xf]
    %v324 = vld [vmem:[%s3 + $0x8c] sm:$0xf]
    %v325 = vld [vmem:[%s3 + $0x90] sm:$0xf]
    %v326 = vld [vmem:[%s3 + $0x94] sm:$0xf]
    %v327 = vld [vmem:[%s3 + $0x98] sm:$0xf]
    %v328 = vld [vmem:[%s3 + $0x9c] sm:$0xf]
    %v329 = vld [vmem:[%s3 + $0xa0] sm:$0xf]
    %v330 = vld [vmem:[%s3 + $0xa4] sm:$0xf]
    %v331 = vld [vmem:[%s3 + $0xa8] sm:$0xf]
    %v332 = vld [vmem:[%s3 + $0xac] sm:$0xf]
    %v333 = vld [vmem:[%s3 + $0xb0] sm:$0xf]
    %v334 = vld [vmem:[%s3 + $0xb4] sm:$0xf]
    %v335 = vld [vmem:[%s3 + $0xb8] sm:$0xf]
    %v336 = vld [vmem:[%s3 + $0xbc] sm:$0xf]
    %v337 = vlaneseq
    %v338 = vshrl.u32 %v337, 7
    %v339 = vsub.s32 3, %v338
    %v340 = vrot.slane %v30, %v339
    %v357 = vunpack.c.l.b16 %v321
    %v358 = vunpack.c.l.b16 %v322
    %v359 = vunpack.c.l.b16 %v323
    %v360 = vunpack.c.l.b16 %v324
    %v361 = vunpack.c.l.b16 %v325
    %v362 = vunpack.c.l.b16 %v326
    %v363 = vunpack.c.l.b16 %v327
    %v364 = vunpack.c.l.b16 %v328
    %v365 = vunpack.c.l.b16 %v329
    %v366 = vunpack.c.l.b16 %v330
    %v367 = vunpack.c.l.b16 %v331
    %v368 = vunpack.c.l.b16 %v332
    %v369 = vunpack.c.l.b16 %v333
    %v370 = vunpack.c.l.b16 %v334
    %v371 = vunpack.c.l.b16 %v335
    %v372 = vunpack.c.l.b16 %v336
    %v373 = vpack.c.b16 %v358, %v357
    %v374 = vpack.c.b16 %v360, %v359
    %v375 = vpack.c.b16 %v362, %v361
    %v376 = vpack.c.b16 %v364, %v363
    %v377 = vpack.c.b16 %v366, %v365
    %v378 = vpack.c.b16 %v368, %v367
    %v379 = vpack.c.b16 %v370, %v369
    %v380 = vpack.c.b16 %v372, %v371
    %389 = vmatprep.subr.bf16.mxu0 0
    %390 = vmatpush1.bf16.msra.mxu0 %v373
    %391 = vmatprep.subr.bf16.mxu0 0
    %392 = vmatpush1.bf16.msra.mxu0 %v374
    %393 = vmatprep.subr.bf16.mxu0 0
    %394 = vmatpush1.bf16.msra.mxu0 %v375
    %395 = vmatprep.subr.bf16.mxu0 0
    %396 = vmatpush1.bf16.msra.mxu0 %v376
    %397 = vmatprep.subr.bf16.mxu0 0
    %398 = vmatpush1.bf16.msra.mxu0 %v377
    %399 = vmatprep.subr.bf16.mxu0 0
    %400 = vmatpush1.bf16.msra.mxu0 %v378
    %401 = vmatprep.subr.bf16.mxu0 0
    %402 = vmatpush1.bf16.msra.mxu0 %v379
    %403 = vmatprep.subr.bf16.mxu0 0
    %404 = vmatpush1.bf16.msra.mxu0 %v380
    %405 = vmatprep.subr.bf16.mxu0 0
    %406 = vmatpush1.bf16.msra.mxu0 0
    %407 = vmatprep.subr.bf16.mxu0 0
    %408 = vmatpush1.bf16.msra.mxu0 0
    %409 = vmatprep.subr.bf16.mxu0 0
    %410 = vmatpush1.bf16.msra.mxu0 0
    %411 = vmatprep.subr.bf16.mxu0 0
    %412 = vmatpush1.bf16.msra.mxu0 0
    %413 = vmatprep.subr.bf16.mxu0 0
    %414 = vmatpush1.bf16.msra.mxu0 0
    %415 = vmatprep.subr.bf16.mxu0 0
    %416 = vmatpush1.bf16.msra.mxu0 0
    %417 = vmatprep.subr.bf16.mxu0 0
    %418 = vmatpush1.bf16.msra.mxu0 0
    %419 = vmatprep.subr.bf16.mxu0 0
    %420 = vmatpush1.bf16.msra.mxu0 0
    %421 = vmatprep.mubr.bf16.mxu0 0
    %422 = vmatmul.mubr.bf16.gmra.mrb[0].mxu0 %v320
    %v423 = vpop.f32.mrb[0].mxu0
    %v424 = vadd.f32 %v340, %v423
    %v425 = vpop.f32.mrb[0].mxu0
    %v426 = vpop.f32.mrb[0].mxu0
    %v427 = vadd.f32 %v340, %v426
    %v428 = vpop.f32.mrb[0].mxu0
    %429 = vdwg.mxu0
    %430 = vadd.xlane.f32.xlu0 %v424
    %v431 = vpop.xlane.xlu0 %430
    %432 = vadd.xlane.f32.xlu0 %v427
    %v433 = vpop.xlane.xlu0 %432
    %v434 = vmul.f32 %v424, %v424
    %v435 = vmul.f32 %v427, %v427
    %436 = vadd.xlane.f32.xlu0 %v434
    %v437 = vpop.xlane.xlu0 %436
    %438 = vadd.xlane.f32.xlu0 %v435
    %v439 = vpop.xlane.xlu0 %438
    %v440 = vmul.f32 %v431, 0.0078125
    %v441 = vmul.f32 %v433, 0.0078125
    %v442 = vmul.f32 %v437, 0.0078125
    %v443 = vmul.f32 %v439, 0.0078125
    %v444 = vmul.f32 %v440, %v440
    %v445 = vmul.f32 %v441, %v441
    %v446 = vsub.f32 %v442, %v444
    %v447 = vsub.f32 %v443, %v445
    %v448 = vmax.f32 %v446, 0.0
    %v449 = vmax.f32 %v447, 0.0
    %v450 = vsub.f32 %v424, %v440
    %v451 = vsub.f32 %v427, %v441
    %v452 = vadd.f32 %v448, 1e-05
    %v453 = vadd.f32 %v449, 1e-05
    %v454 = vrsqrt.pop %v452
    %v455 = vrsqrt.pop %v453
    %v456 = vmul.f32 %v450, %v454
    %v457 = vmul.f32 %v451, %v455
    %v458 = vlaneseq
    %v459 = vshrl.u32 %v458, 7
    %v460 = vsub.s32 4, %v459
    %v461 = vrot.slane %v30, %v460
    %v462 = vmul.f32 %v456, %v461
    %v463 = vmul.f32 %v457, %v461
    %v464 = vlaneseq
    %v465 = vshrl.u32 %v464, 7
    %v466 = vsub.s32 5, %v465
    %v467 = vrot.slane %v30, %v466
    %v468 = vadd.f32 %v462, %v467
    %v469 = vadd.f32 %v463, %v467
    %v470 = vmax.f32 %v468, 0.0
    %v471 = vmax.f32 %v469, 0.0
    %v472 = vpack.c.bf16 %v471, %v470
    %v473 = vld [vmem:[%s3 + $0xc0] sm:$0xf]
    %v474 = vld [vmem:[%s3 + $0xc4] sm:$0xf]
    %v475 = vld [vmem:[%s3 + $0xc8] sm:$0xf]
    %v476 = vld [vmem:[%s3 + $0xcc] sm:$0xf]
    %v477 = vld [vmem:[%s3 + $0xd0] sm:$0xf]
    %v478 = vld [vmem:[%s3 + $0xd4] sm:$0xf]
    %v479 = vld [vmem:[%s3 + $0xd8] sm:$0xf]
    %v480 = vld [vmem:[%s3 + $0xdc] sm:$0xf]
    %v481 = vld [vmem:[%s3 + $0xe0] sm:$0xf]
    %v482 = vld [vmem:[%s3 + $0xe4] sm:$0xf]
    %v483 = vld [vmem:[%s3 + $0xe8] sm:$0xf]
    %v484 = vld [vmem:[%s3 + $0xec] sm:$0xf]
    %v485 = vld [vmem:[%s3 + $0xf0] sm:$0xf]
    %v486 = vld [vmem:[%s3 + $0xf4] sm:$0xf]
    %v487 = vld [vmem:[%s3 + $0xf8] sm:$0xf]
    %v488 = vld [vmem:[%s3 + $0xfc] sm:$0xf]
    %v489 = vlaneseq
    %v490 = vshrl.u32 %v489, 7
    %v491 = vsub.s32 6, %v490
    %v492 = vrot.slane %v30, %v491
    %v509 = vunpack.c.l.b16 %v473
    %v510 = vunpack.c.l.b16 %v474
    %v511 = vunpack.c.l.b16 %v475
    %v512 = vunpack.c.l.b16 %v476
    %v513 = vunpack.c.l.b16 %v477
    %v514 = vunpack.c.l.b16 %v478
    %v515 = vunpack.c.l.b16 %v479
    %v516 = vunpack.c.l.b16 %v480
    %v517 = vunpack.c.l.b16 %v481
    %v518 = vunpack.c.l.b16 %v482
    %v519 = vunpack.c.l.b16 %v483
    %v520 = vunpack.c.l.b16 %v484
    %v521 = vunpack.c.l.b16 %v485
    %v522 = vunpack.c.l.b16 %v486
    %v523 = vunpack.c.l.b16 %v487
    %v524 = vunpack.c.l.b16 %v488
    %v525 = vpack.c.b16 %v510, %v509
    %v526 = vpack.c.b16 %v512, %v511
    %v527 = vpack.c.b16 %v514, %v513
    %v528 = vpack.c.b16 %v516, %v515
    %v529 = vpack.c.b16 %v518, %v517
    %v530 = vpack.c.b16 %v520, %v519
    %v531 = vpack.c.b16 %v522, %v521
    %v532 = vpack.c.b16 %v524, %v523
    %541 = vmatprep.subr.bf16.mxu0 0
    %542 = vmatpush1.bf16.msra.mxu0 %v525
    %543 = vmatprep.subr.bf16.mxu0 0
    %544 = vmatpush1.bf16.msra.mxu0 %v526
    %545 = vmatprep.subr.bf16.mxu0 0
    %546 = vmatpush1.bf16.msra.mxu0 %v527
    %547 = vmatprep.subr.bf16.mxu0 0
    %548 = vmatpush1.bf16.msra.mxu0 %v528
    %549 = vmatprep.subr.bf16.mxu0 0
    %550 = vmatpush1.bf16.msra.mxu0 %v529
    %551 = vmatprep.subr.bf16.mxu0 0
    %552 = vmatpush1.bf16.msra.mxu0 %v530
    %553 = vmatprep.subr.bf16.mxu0 0
    %554 = vmatpush1.bf16.msra.mxu0 %v531
    %555 = vmatprep.subr.bf16.mxu0 0
    %556 = vmatpush1.bf16.msra.mxu0 %v532
    %557 = vmatprep.subr.bf16.mxu0 0
    %558 = vmatpush1.bf16.msra.mxu0 0
    %559 = vmatprep.subr.bf16.mxu0 0
    %560 = vmatpush1.bf16.msra.mxu0 0
    %561 = vmatprep.subr.bf16.mxu0 0
    %562 = vmatpush1.bf16.msra.mxu0 0
    %563 = vmatprep.subr.bf16.mxu0 0
    %564 = vmatpush1.bf16.msra.mxu0 0
    %565 = vmatprep.subr.bf16.mxu0 0
    %566 = vmatpush1.bf16.msra.mxu0 0
    %567 = vmatprep.subr.bf16.mxu0 0
    %568 = vmatpush1.bf16.msra.mxu0 0
    %569 = vmatprep.subr.bf16.mxu0 0
    %570 = vmatpush1.bf16.msra.mxu0 0
    %571 = vmatprep.subr.bf16.mxu0 0
    %572 = vmatpush1.bf16.msra.mxu0 0
    %573 = vmatprep.mubr.bf16.mxu0 0
    %574 = vmatmul.mubr.bf16.gmra.mrb[0].mxu0 %v472
    %v575 = vpop.f32.mrb[0].mxu0
    %v576 = vadd.f32 %v492, %v575
    %v577 = vpop.f32.mrb[0].mxu0
    %v578 = vpop.f32.mrb[0].mxu0
    %v579 = vadd.f32 %v492, %v578
    %v580 = vpop.f32.mrb[0].mxu0
    %581 = vdwg.mxu0
    %582 = vadd.xlane.f32.xlu0 %v576
    %v583 = vpop.xlane.xlu0 %582
    %584 = vadd.xlane.f32.xlu0 %v579
    %v585 = vpop.xlane.xlu0 %584
    %v586 = vmul.f32 %v576, %v576
    %v587 = vmul.f32 %v579, %v579
    %588 = vadd.xlane.f32.xlu0 %v586
    %v589 = vpop.xlane.xlu0 %588
    %590 = vadd.xlane.f32.xlu0 %v587
    %v591 = vpop.xlane.xlu0 %590
    %v592 = vmul.f32 %v583, 0.0078125
    %v593 = vmul.f32 %v585, 0.0078125
    %v594 = vmul.f32 %v589, 0.0078125
    %v595 = vmul.f32 %v591, 0.0078125
    %v596 = vmul.f32 %v592, %v592
    %v597 = vmul.f32 %v593, %v593
    %v598 = vsub.f32 %v594, %v596
    %v599 = vsub.f32 %v595, %v597
    %v600 = vmax.f32 %v598, 0.0
    %v601 = vmax.f32 %v599, 0.0
    %v602 = vsub.f32 %v576, %v592
    %v603 = vsub.f32 %v579, %v593
    %v604 = vadd.f32 %v600, 1e-05
    %v605 = vadd.f32 %v601, 1e-05
    %v606 = vrsqrt.pop %v604
    %v607 = vrsqrt.pop %v605
    %v608 = vmul.f32 %v602, %v606
    %v609 = vmul.f32 %v603, %v607
    %v610 = vlaneseq
    %v611 = vshrl.u32 %v610, 7
    %v612 = vsub.s32 7, %v611
    %v613 = vrot.slane %v30, %v612
    %v614 = vmul.f32 %v608, %v613
    %v615 = vmul.f32 %v609, %v613
    %v616 = vlaneseq
    %v617 = vshrl.u32 %v616, 7
    %v618 = vsub.s32 0, %v617
    %v619 = vrot.slane %v31, %v618
    %v620 = vadd.f32 %v614, %v619
    %v621 = vadd.f32 %v615, %v619
    %v622 = vmax.f32 %v620, 0.0
    %v623 = vmax.f32 %v621, 0.0
    %v624 = vlaneseq
    %v625 = vshrl.u32 %v624, 7
    %v626 = vsub.s32 2, %v625
    %v627 = vrot.slane %v31, %v626
    %v628 = vmul.f32 %v622, %v627
    %v629 = vmul.f32 %v623, %v627
    %630 = vadd.xlane.f32.xlu0 %v628
    %v631 = vpop.xlane.xlu0 %630
    %632 = vadd.xlane.f32.xlu0 %v629
    %v633 = vpop.xlane.xlu0 %632
    %v634 = vlaneseq
    %v635 = vshrl.u32 %v634, 7
    %v636 = vsub.s32 3, %v635
    %v637 = vrot.slane %v31, %v636
    %v638 = vadd.f32 %v631, %v637
    %v639 = vadd.f32 %v633, %v637
    %v641 = vunpack.c.l.b16 %v472
    %v642 = vunpack.c.h.b16 %v472
    %v643 = vpack.c.b16 %v641, %v641
    %v644 = vpack.c.b16 %v642, %v642
    %647 = vst [vmem:[%s5] sm:$0xf] %v643
    %648 = vst [vmem:[%s5 + $0x4] sm:$0xf] %v644
    %vm649 = vcmask 7168
    %650 = vst.msk [vmem:[#allocation2] sm:$0xff] %vm649, %v638
    %651 = vst.msk [vmem:[#allocation2 + $0x8] sm:$0xff] %vm649, %v639
    // Predicated region
    $region22: #{egnn_full_forward.10} parent=1 // pred_check
      _
    $region23: #{egnn_full_forward.10} parent=1 // pred_check_branch
      %653 = sbr.rel (0) target = $region25
    $region24: #{egnn_full_forward.10} parent=1 // pred_region
      _
    $region25: #{egnn_full_forward.10} parent=1 // pred_fallthru
      _
    // Predicated region
    $region26: #{egnn_full_forward.10} parent=1 // pred_check
      _
    $region27: #{egnn_full_forward.10} parent=1 // pred_check_branch
      %655 = sbr.rel (0) target = $region29
    $region28: #{egnn_full_forward.10} parent=1 // pred_region
      %s657 = ssub.s32 256, 256
      %658 = vsyncadd [#allocation3], %s657
      %s659 = sshll.u32 [#allocation2], 4
      %s660 = int_to_ptr.vmem [resolvable:$true] %s659
      %665 = dma.vmem_to_hbm [thread:$0]  %s660, 256, %s6, [#allocation3], 128, 128, 8
    $region29: #{egnn_full_forward.10} parent=1 // pred_fallthru
      _
    // Predicated region
    $region30: #{egnn_full_forward.10} parent=1 // pred_check
      _
    $region31: #{egnn_full_forward.10} parent=1 // pred_check_branch
      %667 = sbr.rel (0) target = $region33
    $region32: #{egnn_full_forward.10} parent=1 // pred_region
      _
    $region33: #{egnn_full_forward.10} parent=1 // pred_fallthru
      _
    // Predicated region
    $region34: #{egnn_full_forward.10} parent=1 // pred_check
      _
    $region35: #{egnn_full_forward.10} parent=1 // pred_check_branch
      %669 = sbr.rel (0) target = $region37
    $region36: #{egnn_full_forward.10} parent=1 // pred_region
      %670 = dma.done [#allocation3], 256
    $region37: #{egnn_full_forward.10} parent=1 // pred_fallthru
      _
    %671 = vsyncpa [#allocation3], 1

</llo_original>
